<compile_context>
chip_gen: v5e
topology: v5e:2x2
jax: 0.10.0
libtpu: 0.0.40
codegen_flags: <defaults>
</compile_context>

<pallas_src>
import jax
import jax.numpy as jnp
from jax import lax
from jax.experimental import pallas as pl
from jax.experimental.pallas import tpu as pltpu


# ---------------------------------------------------------------------------
# In-kernel building blocks (operate on values already resident in VMEM/vregs)
# ---------------------------------------------------------------------------
def _circ_taps(x):
    """x: (Cin, L) -> (x[(l-1)%L], x[(l+1)%L]), each (Cin, L)."""
    L = x.shape[1]
    xm1 = jnp.concatenate([x[:, L - 1:], x[:, :L - 1]], axis=1)
    xp1 = jnp.concatenate([x[:, 1:], x[:, :1]], axis=1)
    return xm1, xp1


def _conv_pre(x, w_ref, b_ref):
    """Circular Conv1d(kernel=3, padding=1) pre-activation.

    x: (Cin, L); w_ref: (Cout, 3*Cin) laid out [tap0 | tap1 | tap2] in
    Cin-sized blocks; b_ref: (Cout, 1).  Returns (Cout, L) float32.
    """
    cin = x.shape[0]
    xm1, xp1 = _circ_taps(x)
    w = w_ref[...]
    if cin == 1:
        # K=1-per-tap matmuls are pure MXU drain latency; use VPU FMAs instead.
        acc = w[:, 0:1] * xm1 + w[:, 1:2] * x + w[:, 2:3] * xp1
    else:
        rhs = jnp.concatenate([xm1, x, xp1], axis=0)            # (3*Cin, L)
        acc = jnp.dot(w, rhs, preferred_element_type=jnp.float32)
    return acc + b_ref[...]


def _maxpool2(a):
    """a: (C, L) -> (C, L//2): max of adjacent lane pairs (2j, 2j+1).

    Even/odd lanes are extracted with two selection matmuls (iota masks);
    avoids strided ref slicing and lane-splitting reshapes.
    """
    L = a.shape[1]
    half = L // 2
    rows = lax.broadcasted_iota(jnp.int32, (L, half), 0)
    cols = lax.broadcasted_iota(jnp.int32, (L, half), 1)
    s_even = (rows == 2 * cols).astype(jnp.float32)             # picks lane 2j
    s_odd = (rows == 2 * cols + 1).astype(jnp.float32)          # picks lane 2j+1
    even = jnp.dot(a, s_even, preferred_element_type=jnp.float32)
    odd = jnp.dot(a, s_odd, preferred_element_type=jnp.float32)
    return jnp.maximum(even, odd)


# ---------------------------------------------------------------------------
# Fused whole-network kernel (one grid step per batch element)
# ---------------------------------------------------------------------------
def _vgg_fused_kernel(*refs):
    (x_ref,
     w1, b1, w2, b2, w3, b3, w4, b4,
     w5, b5, w6, b6, w7, b7, w8, b8,
     fw1, fb1, fw2, fb2, fw3, fb3,
     out_ref) = refs

    x = x_ref[0]                                        # (1, L)
    # tanh is strictly increasing => tanh(maxpool(a)) == maxpool(tanh(a)).
    x = jnp.tanh(_maxpool2(_conv_pre(x, w1, b1)))       # (c1, L/2)
    x = jnp.tanh(_maxpool2(_conv_pre(x, w2, b2)))       # (c2, L/4)
    x = jnp.tanh(_conv_pre(x, w3, b3))                  # (c3, L/4)
    x = jnp.tanh(_maxpool2(_conv_pre(x, w4, b4)))       # (c3, L/8)
    x = jnp.tanh(_conv_pre(x, w5, b5))                  # (c4, L/8)
    x = jnp.tanh(_maxpool2(_conv_pre(x, w6, b6)))       # (c4, L/16)
    x = jnp.tanh(_conv_pre(x, w7, b7))                  # (c4, L/16)
    x = jnp.tanh(_maxpool2(_conv_pre(x, w8, b8)))       # (c4, L/32)

    # torch .view((-1, input1)): channel-major flatten (C, Lf) -> (1, C*Lf),
    # built by lane-concatenation (no sublane->lane reshape needed).
    C = x.shape[0]
    feat = jnp.concatenate([x[c:c + 1, :] for c in range(C)], axis=1)

    h = jnp.tanh(jnp.dot(feat, fw1[...], preferred_element_type=jnp.float32) + fb1[...])
    h = jnp.tanh(jnp.dot(h, fw2[...], preferred_element_type=jnp.float32) + fb2[...])
    out = jnp.dot(h, fw3[...], preferred_element_type=jnp.float32) + fb3[...]
    out_ref[0] = out                                    # (1, 17)


# ---------------------------------------------------------------------------
# Host-side wrapper: weight repacking + one pallas_call
# ---------------------------------------------------------------------------
_CONV_NAMES = ("conv1", "conv2", "conv3", "conv4", "conv5", "conv6", "conv7", "conv8")
_FC_NAMES = ("fc1", "fc2", "fc3")


def _const_spec(shape):
    # Full-array 2-D block, constant across the batch grid.
    return pl.BlockSpec(tuple(shape), lambda b: (0, 0))


def vgg11_forward(x, params):
    """x: (B, L) float32 -> (B, 17) float32 via one fused Pallas kernel."""
    B, L = x.shape
    inputs = [x.reshape(B, 1, L)]                       # torch unsqueeze(1)
    in_specs = [pl.BlockSpec((1, 1, L), lambda b: (b, 0, 0))]

    for name in _CONV_NAMES:
        w, b = params[name]                             # (Cout, Cin, 3), (Cout,)
        cout, cin, _ = w.shape
        # (Cout, Cin, 3) -> (Cout, 3*Cin): tap-major blocks of size Cin.
        w_flat = jnp.transpose(w, (0, 2, 1)).reshape(cout, 3 * cin)
        b2 = b.reshape(cout, 1)
        inputs += [w_flat, b2]
        in_specs += [_const_spec(w_flat.shape), _const_spec(b2.shape)]

    for name in _FC_NAMES:
        w, b = params[name]                             # (Din, Dout), (Dout,)
        b2 = b.reshape(1, -1)
        inputs += [w, b2]
        in_specs += [_const_spec(w.shape), _const_spec(b2.shape)]

    out = pl.pallas_call(
        _vgg_fused_kernel,
        out_shape=jax.ShapeDtypeStruct((B, 1, 17), jnp.float32),
        grid=(B,),
        in_specs=in_specs,
        out_specs=pl.BlockSpec((1, 1, 17), lambda b: (b, 0, 0)),
        compiler_params=pltpu.CompilerParams(dimension_semantics=("parallel",)),
    )(*inputs)
    # TODO(synk): for large batches on v7x, shard the batch grid axis across
    # the 2 TensorCores explicitly (core_map); moot at B=2.
    return out.reshape(B, 17)


# ---------------------------------------------------------------------------
# Deterministic parameter initialization (PyTorch-style fan-in uniform bounds)
# ---------------------------------------------------------------------------
def init_params(key, layer_list):
    c1, c2, c3, c4, in1, in2, in3 = layer_list

    def conv_init(k, cout, cin):
        k1, k2 = jax.random.split(k)
        bound = 1.0 / (cin * 3) ** 0.5
        w = jax.random.uniform(k1, (cout, cin, 3), jnp.float32, -bound, bound)
        b = jax.random.uniform(k2, (cout,), jnp.float32, -bound, bound)
        return w, b

    def fc_init(k, din, dout):
        k1, k2 = jax.random.split(k)
        bound = 1.0 / din ** 0.5
        w = jax.random.uniform(k1, (din, dout), jnp.float32, -bound, bound)
        b = jax.random.uniform(k2, (dout,), jnp.float32, -bound, bound)
        return w, b

    ks = jax.random.split(key, 11)
    return {
        "conv1": conv_init(ks[0], c1, 1),
        "conv2": conv_init(ks[1], c2, c1),
        "conv3": conv_init(ks[2], c3, c2),
        "conv4": conv_init(ks[3], c3, c3),
        "conv5": conv_init(ks[4], c4, c3),
        "conv6": conv_init(ks[5], c4, c4),
        "conv7": conv_init(ks[6], c4, c4),
        "conv8": conv_init(ks[7], c4, c4),
        "fc1": fc_init(ks[8], in1, in2),
        "fc2": fc_init(ks[9], in2, in3),
        "fc3": fc_init(ks[10], in3, 17),
    }


if __name__ == "__main__":
    B, L = 2, 128                       # 5 pools of stride 2 -> final length 4
    c1, c2, c3, c4 = 4, 8, 16, 16
    input1 = c4 * (L // 32)             # 64
    input2, input3 = 32, 16
    layer_list = [c1, c2, c3, c4, input1, input2, input3]

    key = jax.random.PRNGKey(0)
    kx, kp = jax.random.split(key)
    x = jax.random.normal(kx, (B, L), jnp.float32)
    params = init_params(kp, layer_list)

    out = jax.jit(vgg11_forward)(x, params)
    out = jax.block_until_ready(out)
    assert out.shape == (B, 17), out.shape
    assert bool(jnp.all(jnp.isfinite(out)))
    print("KERNEL_OK")
</pallas_src>

<mosaic_0001>
module attributes {stable_mosaic.version = 11 : i64} {
  func.func @_vgg_fused_kernel(%arg0: i32, %arg1: memref<1x1x128xf32, #tpu.memory_space<vmem>>, %arg2: memref<4x3xf32, #tpu.memory_space<vmem>>, %arg3: memref<4x1xf32, #tpu.memory_space<vmem>>, %arg4: memref<8x12xf32, #tpu.memory_space<vmem>>, %arg5: memref<8x1xf32, #tpu.memory_space<vmem>>, %arg6: memref<16x24xf32, #tpu.memory_space<vmem>>, %arg7: memref<16x1xf32, #tpu.memory_space<vmem>>, %arg8: memref<16x48xf32, #tpu.memory_space<vmem>>, %arg9: memref<16x1xf32, #tpu.memory_space<vmem>>, %arg10: memref<16x48xf32, #tpu.memory_space<vmem>>, %arg11: memref<16x1xf32, #tpu.memory_space<vmem>>, %arg12: memref<16x48xf32, #tpu.memory_space<vmem>>, %arg13: memref<16x1xf32, #tpu.memory_space<vmem>>, %arg14: memref<16x48xf32, #tpu.memory_space<vmem>>, %arg15: memref<16x1xf32, #tpu.memory_space<vmem>>, %arg16: memref<16x48xf32, #tpu.memory_space<vmem>>, %arg17: memref<16x1xf32, #tpu.memory_space<vmem>>, %arg18: memref<64x32xf32, #tpu.memory_space<vmem>>, %arg19: memref<1x32xf32, #tpu.memory_space<vmem>>, %arg20: memref<32x16xf32, #tpu.memory_space<vmem>>, %arg21: memref<1x16xf32, #tpu.memory_space<vmem>>, %arg22: memref<16x17xf32, #tpu.memory_space<vmem>>, %arg23: memref<1x17xf32, #tpu.memory_space<vmem>>, %arg24: memref<1x1x17xf32, #tpu.memory_space<vmem>>) attributes {dimension_semantics = [#tpu.dimension_semantics<parallel>], iteration_bounds = array<i64: 2>, scalar_prefetch = 0 : i64, scratch_operands = 0 : i64, tpu.core_type = #tpu.core_type<tc>, window_params = [{transform_indices = @transform_0, window_bounds = array<i64: 1, 1, 128>}, {pipeline_mode = #tpu.pipeline_mode<synchronous>, transform_indices = @transform_1, window_bounds = array<i64: 4, 3>}, {pipeline_mode = #tpu.pipeline_mode<synchronous>, transform_indices = @transform_2, window_bounds = array<i64: 4, 1>}, {pipeline_mode = #tpu.pipeline_mode<synchronous>, transform_indices = @transform_3, window_bounds = array<i64: 8, 12>}, {pipeline_mode = #tpu.pipeline_mode<synchronous>, transform_indices = @transform_4, window_bounds = array<i64: 8, 1>}, {pipeline_mode = #tpu.pipeline_mode<synchronous>, transform_indices = @transform_5, window_bounds = array<i64: 16, 24>}, {pipeline_mode = #tpu.pipeline_mode<synchronous>, transform_indices = @transform_6, window_bounds = array<i64: 16, 1>}, {pipeline_mode = #tpu.pipeline_mode<synchronous>, transform_indices = @transform_7, window_bounds = array<i64: 16, 48>}, {pipeline_mode = #tpu.pipeline_mode<synchronous>, transform_indices = @transform_8, window_bounds = array<i64: 16, 1>}, {pipeline_mode = #tpu.pipeline_mode<synchronous>, transform_indices = @transform_9, window_bounds = array<i64: 16, 48>}, {pipeline_mode = #tpu.pipeline_mode<synchronous>, transform_indices = @transform_10, window_bounds = array<i64: 16, 1>}, {pipeline_mode = #tpu.pipeline_mode<synchronous>, transform_indices = @transform_11, window_bounds = array<i64: 16, 48>}, {pipeline_mode = #tpu.pipeline_mode<synchronous>, transform_indices = @transform_12, window_bounds = array<i64: 16, 1>}, {pipeline_mode = #tpu.pipeline_mode<synchronous>, transform_indices = @transform_13, window_bounds = array<i64: 16, 48>}, {pipeline_mode = #tpu.pipeline_mode<synchronous>, transform_indices = @transform_14, window_bounds = array<i64: 16, 1>}, {pipeline_mode = #tpu.pipeline_mode<synchronous>, transform_indices = @transform_15, window_bounds = array<i64: 16, 48>}, {pipeline_mode = #tpu.pipeline_mode<synchronous>, transform_indices = @transform_16, window_bounds = array<i64: 16, 1>}, {pipeline_mode = #tpu.pipeline_mode<synchronous>, transform_indices = @transform_17, window_bounds = array<i64: 64, 32>}, {pipeline_mode = #tpu.pipeline_mode<synchronous>, transform_indices = @transform_18, window_bounds = array<i64: 1, 32>}, {pipeline_mode = #tpu.pipeline_mode<synchronous>, transform_indices = @transform_19, window_bounds = array<i64: 32, 16>}, {pipeline_mode = #tpu.pipeline_mode<synchronous>, transform_indices = @transform_20, window_bounds = array<i64: 1, 16>}, {pipeline_mode = #tpu.pipeline_mode<synchronous>, transform_indices = @transform_21, window_bounds = array<i64: 16, 17>}, {pipeline_mode = #tpu.pipeline_mode<synchronous>, transform_indices = @transform_22, window_bounds = array<i64: 1, 17>}, {transform_indices = @transform_23, window_bounds = array<i64: 1, 1, 17>}]} {
    %c0 = arith.constant 0 : index
    %c0_0 = arith.constant 0 : index
    %c0_1 = arith.constant 0 : index
    %0 = vector.load %arg1[%c0, %c0_0, %c0_1] : memref<1x1x128xf32, #tpu.memory_space<vmem>>, vector<1x1x128xf32>
    %1 = vector.shape_cast %0 : vector<1x1x128xf32> to vector<1x128xf32>
    %2 = vector.extract_strided_slice %1 {offsets = [0, 127], sizes = [1, 1], strides = [1, 1]} : vector<1x128xf32> to vector<1x1xf32>
    %3 = vector.extract_strided_slice %1 {offsets = [0, 0], sizes = [1, 127], strides = [1, 1]} : vector<1x128xf32> to vector<1x127xf32>
    %4 = tpu.concatenate %2, %3 in 1 : vector<1x1xf32>, vector<1x127xf32> -> vector<1x128xf32>
    %5 = vector.extract_strided_slice %1 {offsets = [0, 1], sizes = [1, 127], strides = [1, 1]} : vector<1x128xf32> to vector<1x127xf32>
    %6 = vector.extract_strided_slice %1 {offsets = [0, 0], sizes = [1, 1], strides = [1, 1]} : vector<1x128xf32> to vector<1x1xf32>
    %7 = tpu.concatenate %5, %6 in 1 : vector<1x127xf32>, vector<1x1xf32> -> vector<1x128xf32>
    %c0_2 = arith.constant 0 : index
    %c0_3 = arith.constant 0 : index
    %8 = vector.load %arg2[%c0_2, %c0_3] : memref<4x3xf32, #tpu.memory_space<vmem>>, vector<4x3xf32>
    %9 = vector.extract_strided_slice %8 {offsets = [0, 0], sizes = [4, 1], strides = [1, 1]} : vector<4x3xf32> to vector<4x1xf32>
    %10 = vector.broadcast %9 : vector<4x1xf32> to vector<4x128xf32>
    %11 = vector.broadcast %4 : vector<1x128xf32> to vector<4x128xf32>
    %12 = arith.mulf %10, %11 : vector<4x128xf32>
    %13 = vector.extract_strided_slice %8 {offsets = [0, 1], sizes = [4, 1], strides = [1, 1]} : vector<4x3xf32> to vector<4x1xf32>
    %14 = vector.broadcast %13 : vector<4x1xf32> to vector<4x128xf32>
    %15 = vector.broadcast %1 : vector<1x128xf32> to vector<4x128xf32>
    %16 = arith.mulf %14, %15 : vector<4x128xf32>
    %17 = arith.addf %12, %16 : vector<4x128xf32>
    %18 = vector.extract_strided_slice %8 {offsets = [0, 2], sizes = [4, 1], strides = [1, 1]} : vector<4x3xf32> to vector<4x1xf32>
    %19 = vector.broadcast %18 : vector<4x1xf32> to vector<4x128xf32>
    %20 = vector.broadcast %7 : vector<1x128xf32> to vector<4x128xf32>
    %21 = arith.mulf %19, %20 : vector<4x128xf32>
    %22 = arith.addf %17, %21 : vector<4x128xf32>
    %c0_4 = arith.constant 0 : index
    %c0_5 = arith.constant 0 : index
    %23 = vector.load %arg3[%c0_4, %c0_5] : memref<4x1xf32, #tpu.memory_space<vmem>>, vector<4x1xf32>
    %24 = vector.broadcast %23 : vector<4x1xf32> to vector<4x128xf32>
    %25 = arith.addf %22, %24 : vector<4x128xf32>
    %26 = tpu.iota {dimensions = array<i32: 0>} : vector<128x64xi32>
    %27 = tpu.iota {dimensions = array<i32: 1>} : vector<128x64xi32>
    %c2_i32 = arith.constant 2 : i32
    %28 = vector.broadcast %c2_i32 : i32 to vector<128x64xi32>
    %29 = arith.muli %28, %27 : vector<128x64xi32>
    %30 = arith.cmpi eq, %26, %29 : vector<128x64xi32>
    %31 = arith.extui %30 : vector<128x64xi1> to vector<128x64xi32>
    %32 = arith.sitofp %31 : vector<128x64xi32> to vector<128x64xf32>
    %c2_i32_6 = arith.constant 2 : i32
    %33 = vector.broadcast %c2_i32_6 : i32 to vector<128x64xi32>
    %34 = arith.muli %33, %27 : vector<128x64xi32>
    %c1_i32 = arith.constant 1 : i32
    %35 = vector.broadcast %c1_i32 : i32 to vector<128x64xi32>
    %36 = arith.addi %34, %35 : vector<128x64xi32>
    %37 = arith.cmpi eq, %26, %36 : vector<128x64xi32>
    %38 = arith.extui %37 : vector<128x64xi1> to vector<128x64xi32>
    %39 = arith.sitofp %38 : vector<128x64xi32> to vector<128x64xf32>
    %cst = arith.constant dense<0.000000e+00> : vector<4x64xf32>
    %40 = tpu.matmul %25, %32, %cst {dimension_numbers = #tpu.dot_dimension_numbers<[1], [0], [0], [1], [0, 0, 1, 1], [], []>} : vector<4x128xf32>, vector<128x64xf32>, vector<4x64xf32> -> vector<4x64xf32>
    %cst_7 = arith.constant dense<0.000000e+00> : vector<4x64xf32>
    %41 = tpu.matmul %25, %39, %cst_7 {dimension_numbers = #tpu.dot_dimension_numbers<[1], [0], [0], [1], [0, 0, 1, 1], [], []>} : vector<4x128xf32>, vector<128x64xf32>, vector<4x64xf32> -> vector<4x64xf32>
    %42 = arith.maximumf %40, %41 : vector<4x64xf32>
    %43 = math.tanh %42 : vector<4x64xf32>
    %44 = vector.extract_strided_slice %43 {offsets = [0, 63], sizes = [4, 1], strides = [1, 1]} : vector<4x64xf32> to vector<4x1xf32>
    %45 = vector.extract_strided_slice %43 {offsets = [0, 0], sizes = [4, 63], strides = [1, 1]} : vector<4x64xf32> to vector<4x63xf32>
    %46 = tpu.concatenate %44, %45 in 1 : vector<4x1xf32>, vector<4x63xf32> -> vector<4x64xf32>
    %47 = vector.extract_strided_slice %43 {offsets = [0, 1], sizes = [4, 63], strides = [1, 1]} : vector<4x64xf32> to vector<4x63xf32>
    %48 = vector.extract_strided_slice %43 {offsets = [0, 0], sizes = [4, 1], strides = [1, 1]} : vector<4x64xf32> to vector<4x1xf32>
    %49 = tpu.concatenate %47, %48 in 1 : vector<4x63xf32>, vector<4x1xf32> -> vector<4x64xf32>
    %c0_8 = arith.constant 0 : index
    %c0_9 = arith.constant 0 : index
    %50 = vector.load %arg4[%c0_8, %c0_9] : memref<8x12xf32, #tpu.memory_space<vmem>>, vector<8x12xf32>
    %51 = tpu.concatenate %46, %43, %49 in 0 : vector<4x64xf32>, vector<4x64xf32>, vector<4x64xf32> -> vector<12x64xf32>
    %cst_10 = arith.constant dense<0.000000e+00> : vector<8x64xf32>
    %52 = tpu.matmul %50, %51, %cst_10 {dimension_numbers = #tpu.dot_dimension_numbers<[1], [0], [0], [1], [0, 0, 1, 1], [], []>} : vector<8x12xf32>, vector<12x64xf32>, vector<8x64xf32> -> vector<8x64xf32>
    %c0_11 = arith.constant 0 : index
    %c0_12 = arith.constant 0 : index
    %53 = vector.load %arg5[%c0_11, %c0_12] : memref<8x1xf32, #tpu.memory_space<vmem>>, vector<8x1xf32>
    %54 = vector.broadcast %53 : vector<8x1xf32> to vector<8x64xf32>
    %55 = arith.addf %52, %54 : vector<8x64xf32>
    %56 = tpu.iota {dimensions = array<i32: 0>} : vector<64x32xi32>
    %57 = tpu.iota {dimensions = array<i32: 1>} : vector<64x32xi32>
    %c2_i32_13 = arith.constant 2 : i32
    %58 = vector.broadcast %c2_i32_13 : i32 to vector<64x32xi32>
    %59 = arith.muli %58, %57 : vector<64x32xi32>
    %60 = arith.cmpi eq, %56, %59 : vector<64x32xi32>
    %61 = arith.extui %60 : vector<64x32xi1> to vector<64x32xi32>
    %62 = arith.sitofp %61 : vector<64x32xi32> to vector<64x32xf32>
    %c2_i32_14 = arith.constant 2 : i32
    %63 = vector.broadcast %c2_i32_14 : i32 to vector<64x32xi32>
    %64 = arith.muli %63, %57 : vector<64x32xi32>
    %c1_i32_15 = arith.constant 1 : i32
    %65 = vector.broadcast %c1_i32_15 : i32 to vector<64x32xi32>
    %66 = arith.addi %64, %65 : vector<64x32xi32>
    %67 = arith.cmpi eq, %56, %66 : vector<64x32xi32>
    %68 = arith.extui %67 : vector<64x32xi1> to vector<64x32xi32>
    %69 = arith.sitofp %68 : vector<64x32xi32> to vector<64x32xf32>
    %cst_16 = arith.constant dense<0.000000e+00> : vector<8x32xf32>
    %70 = tpu.matmul %55, %62, %cst_16 {dimension_numbers = #tpu.dot_dimension_numbers<[1], [0], [0], [1], [0, 0, 1, 1], [], []>} : vector<8x64xf32>, vector<64x32xf32>, vector<8x32xf32> -> vector<8x32xf32>
    %cst_17 = arith.constant dense<0.000000e+00> : vector<8x32xf32>
    %71 = tpu.matmul %55, %69, %cst_17 {dimension_numbers = #tpu.dot_dimension_numbers<[1], [0], [0], [1], [0, 0, 1, 1], [], []>} : vector<8x64xf32>, vector<64x32xf32>, vector<8x32xf32> -> vector<8x32xf32>
    %72 = arith.maximumf %70, %71 : vector<8x32xf32>
    %73 = math.tanh %72 : vector<8x32xf32>
    %74 = vector.extract_strided_slice %73 {offsets = [0, 31], sizes = [8, 1], strides = [1, 1]} : vector<8x32xf32> to vector<8x1xf32>
    %75 = vector.extract_strided_slice %73 {offsets = [0, 0], sizes = [8, 31], strides = [1, 1]} : vector<8x32xf32> to vector<8x31xf32>
    %76 = tpu.concatenate %74, %75 in 1 : vector<8x1xf32>, vector<8x31xf32> -> vector<8x32xf32>
    %77 = vector.extract_strided_slice %73 {offsets = [0, 1], sizes = [8, 31], strides = [1, 1]} : vector<8x32xf32> to vector<8x31xf32>
    %78 = vector.extract_strided_slice %73 {offsets = [0, 0], sizes = [8, 1], strides = [1, 1]} : vector<8x32xf32> to vector<8x1xf32>
    %79 = tpu.concatenate %77, %78 in 1 : vector<8x31xf32>, vector<8x1xf32> -> vector<8x32xf32>
    %c0_18 = arith.constant 0 : index
    %c0_19 = arith.constant 0 : index
    %80 = vector.load %arg6[%c0_18, %c0_19] : memref<16x24xf32, #tpu.memory_space<vmem>>, vector<16x24xf32>
    %81 = tpu.concatenate %76, %73, %79 in 0 : vector<8x32xf32>, vector<8x32xf32>, vector<8x32xf32> -> vector<24x32xf32>
    %cst_20 = arith.constant dense<0.000000e+00> : vector<16x32xf32>
    %82 = tpu.matmul %80, %81, %cst_20 {dimension_numbers = #tpu.dot_dimension_numbers<[1], [0], [0], [1], [0, 0, 1, 1], [], []>} : vector<16x24xf32>, vector<24x32xf32>, vector<16x32xf32> -> vector<16x32xf32>
    %c0_21 = arith.constant 0 : index
    %c0_22 = arith.constant 0 : index
    %83 = vector.load %arg7[%c0_21, %c0_22] : memref<16x1xf32, #tpu.memory_space<vmem>>, vector<16x1xf32>
    %84 = vector.broadcast %83 : vector<16x1xf32> to vector<16x32xf32>
    %85 = arith.addf %82, %84 : vector<16x32xf32>
    %86 = math.tanh %85 : vector<16x32xf32>
    %87 = vector.extract_strided_slice %86 {offsets = [0, 31], sizes = [16, 1], strides = [1, 1]} : vector<16x32xf32> to vector<16x1xf32>
    %88 = vector.extract_strided_slice %86 {offsets = [0, 0], sizes = [16, 31], strides = [1, 1]} : vector<16x32xf32> to vector<16x31xf32>
    %89 = tpu.concatenate %87, %88 in 1 : vector<16x1xf32>, vector<16x31xf32> -> vector<16x32xf32>
    %90 = vector.extract_strided_slice %86 {offsets = [0, 1], sizes = [16, 31], strides = [1, 1]} : vector<16x32xf32> to vector<16x31xf32>
    %91 = vector.extract_strided_slice %86 {offsets = [0, 0], sizes = [16, 1], strides = [1, 1]} : vector<16x32xf32> to vector<16x1xf32>
    %92 = tpu.concatenate %90, %91 in 1 : vector<16x31xf32>, vector<16x1xf32> -> vector<16x32xf32>
    %c0_23 = arith.constant 0 : index
    %c0_24 = arith.constant 0 : index
    %93 = vector.load %arg8[%c0_23, %c0_24] : memref<16x48xf32, #tpu.memory_space<vmem>>, vector<16x48xf32>
    %94 = tpu.concatenate %89, %86, %92 in 0 : vector<16x32xf32>, vector<16x32xf32>, vector<16x32xf32> -> vector<48x32xf32>
    %cst_25 = arith.constant dense<0.000000e+00> : vector<16x32xf32>
    %95 = tpu.matmul %93, %94, %cst_25 {dimension_numbers = #tpu.dot_dimension_numbers<[1], [0], [0], [1], [0, 0, 1, 1], [], []>} : vector<16x48xf32>, vector<48x32xf32>, vector<16x32xf32> -> vector<16x32xf32>
    %c0_26 = arith.constant 0 : index
    %c0_27 = arith.constant 0 : index
    %96 = vector.load %arg9[%c0_26, %c0_27] : memref<16x1xf32, #tpu.memory_space<vmem>>, vector<16x1xf32>
    %97 = vector.broadcast %96 : vector<16x1xf32> to vector<16x32xf32>
    %98 = arith.addf %95, %97 : vector<16x32xf32>
    %99 = tpu.iota {dimensions = array<i32: 0>} : vector<32x16xi32>
    %100 = tpu.iota {dimensions = array<i32: 1>} : vector<32x16xi32>
    %c2_i32_28 = arith.constant 2 : i32
    %101 = vector.broadcast %c2_i32_28 : i32 to vector<32x16xi32>
    %102 = arith.muli %101, %100 : vector<32x16xi32>
    %103 = arith.cmpi eq, %99, %102 : vector<32x16xi32>
    %104 = arith.extui %103 : vector<32x16xi1> to vector<32x16xi32>
    %105 = arith.sitofp %104 : vector<32x16xi32> to vector<32x16xf32>
    %c2_i32_29 = arith.constant 2 : i32
    %106 = vector.broadcast %c2_i32_29 : i32 to vector<32x16xi32>
    %107 = arith.muli %106, %100 : vector<32x16xi32>
    %c1_i32_30 = arith.constant 1 : i32
    %108 = vector.broadcast %c1_i32_30 : i32 to vector<32x16xi32>
    %109 = arith.addi %107, %108 : vector<32x16xi32>
    %110 = arith.cmpi eq, %99, %109 : vector<32x16xi32>
    %111 = arith.extui %110 : vector<32x16xi1> to vector<32x16xi32>
    %112 = arith.sitofp %111 : vector<32x16xi32> to vector<32x16xf32>
    %cst_31 = arith.constant dense<0.000000e+00> : vector<16x16xf32>
    %113 = tpu.matmul %98, %105, %cst_31 {dimension_numbers = #tpu.dot_dimension_numbers<[1], [0], [0], [1], [0, 0, 1, 1], [], []>} : vector<16x32xf32>, vector<32x16xf32>, vector<16x16xf32> -> vector<16x16xf32>
    %cst_32 = arith.constant dense<0.000000e+00> : vector<16x16xf32>
    %114 = tpu.matmul %98, %112, %cst_32 {dimension_numbers = #tpu.dot_dimension_numbers<[1], [0], [0], [1], [0, 0, 1, 1], [], []>} : vector<16x32xf32>, vector<32x16xf32>, vector<16x16xf32> -> vector<16x16xf32>
    %115 = arith.maximumf %113, %114 : vector<16x16xf32>
    %116 = math.tanh %115 : vector<16x16xf32>
    %117 = vector.extract_strided_slice %116 {offsets = [0, 15], sizes = [16, 1], strides = [1, 1]} : vector<16x16xf32> to vector<16x1xf32>
    %118 = vector.extract_strided_slice %116 {offsets = [0, 0], sizes = [16, 15], strides = [1, 1]} : vector<16x16xf32> to vector<16x15xf32>
    %119 = tpu.concatenate %117, %118 in 1 : vector<16x1xf32>, vector<16x15xf32> -> vector<16x16xf32>
    %120 = vector.extract_strided_slice %116 {offsets = [0, 1], sizes = [16, 15], strides = [1, 1]} : vector<16x16xf32> to vector<16x15xf32>
    %121 = vector.extract_strided_slice %116 {offsets = [0, 0], sizes = [16, 1], strides = [1, 1]} : vector<16x16xf32> to vector<16x1xf32>
    %122 = tpu.concatenate %120, %121 in 1 : vector<16x15xf32>, vector<16x1xf32> -> vector<16x16xf32>
    %c0_33 = arith.constant 0 : index
    %c0_34 = arith.constant 0 : index
    %123 = vector.load %arg10[%c0_33, %c0_34] : memref<16x48xf32, #tpu.memory_space<vmem>>, vector<16x48xf32>
    %124 = tpu.concatenate %119, %116, %122 in 0 : vector<16x16xf32>, vector<16x16xf32>, vector<16x16xf32> -> vector<48x16xf32>
    %cst_35 = arith.constant dense<0.000000e+00> : vector<16x16xf32>
    %125 = tpu.matmul %123, %124, %cst_35 {dimension_numbers = #tpu.dot_dimension_numbers<[1], [0], [0], [1], [0, 0, 1, 1], [], []>} : vector<16x48xf32>, vector<48x16xf32>, vector<16x16xf32> -> vector<16x16xf32>
    %c0_36 = arith.constant 0 : index
    %c0_37 = arith.constant 0 : index
    %126 = vector.load %arg11[%c0_36, %c0_37] : memref<16x1xf32, #tpu.memory_space<vmem>>, vector<16x1xf32>
    %127 = vector.broadcast %126 : vector<16x1xf32> to vector<16x16xf32>
    %128 = arith.addf %125, %127 : vector<16x16xf32>
    %129 = math.tanh %128 : vector<16x16xf32>
    %130 = vector.extract_strided_slice %129 {offsets = [0, 15], sizes = [16, 1], strides = [1, 1]} : vector<16x16xf32> to vector<16x1xf32>
    %131 = vector.extract_strided_slice %129 {offsets = [0, 0], sizes = [16, 15], strides = [1, 1]} : vector<16x16xf32> to vector<16x15xf32>
    %132 = tpu.concatenate %130, %131 in 1 : vector<16x1xf32>, vector<16x15xf32> -> vector<16x16xf32>
    %133 = vector.extract_strided_slice %129 {offsets = [0, 1], sizes = [16, 15], strides = [1, 1]} : vector<16x16xf32> to vector<16x15xf32>
    %134 = vector.extract_strided_slice %129 {offsets = [0, 0], sizes = [16, 1], strides = [1, 1]} : vector<16x16xf32> to vector<16x1xf32>
    %135 = tpu.concatenate %133, %134 in 1 : vector<16x15xf32>, vector<16x1xf32> -> vector<16x16xf32>
    %c0_38 = arith.constant 0 : index
    %c0_39 = arith.constant 0 : index
    %136 = vector.load %arg12[%c0_38, %c0_39] : memref<16x48xf32, #tpu.memory_space<vmem>>, vector<16x48xf32>
    %137 = tpu.concatenate %132, %129, %135 in 0 : vector<16x16xf32>, vector<16x16xf32>, vector<16x16xf32> -> vector<48x16xf32>
    %cst_40 = arith.constant dense<0.000000e+00> : vector<16x16xf32>
    %138 = tpu.matmul %136, %137, %cst_40 {dimension_numbers = #tpu.dot_dimension_numbers<[1], [0], [0], [1], [0, 0, 1, 1], [], []>} : vector<16x48xf32>, vector<48x16xf32>, vector<16x16xf32> -> vector<16x16xf32>
    %c0_41 = arith.constant 0 : index
    %c0_42 = arith.constant 0 : index
    %139 = vector.load %arg13[%c0_41, %c0_42] : memref<16x1xf32, #tpu.memory_space<vmem>>, vector<16x1xf32>
    %140 = vector.broadcast %139 : vector<16x1xf32> to vector<16x16xf32>
    %141 = arith.addf %138, %140 : vector<16x16xf32>
    %142 = tpu.iota {dimensions = array<i32: 0>} : vector<16x8xi32>
    %143 = tpu.iota {dimensions = array<i32: 1>} : vector<16x8xi32>
    %c2_i32_43 = arith.constant 2 : i32
    %144 = vector.broadcast %c2_i32_43 : i32 to vector<16x8xi32>
    %145 = arith.muli %144, %143 : vector<16x8xi32>
    %146 = arith.cmpi eq, %142, %145 : vector<16x8xi32>
    %147 = arith.extui %146 : vector<16x8xi1> to vector<16x8xi32>
    %148 = arith.sitofp %147 : vector<16x8xi32> to vector<16x8xf32>
    %c2_i32_44 = arith.constant 2 : i32
    %149 = vector.broadcast %c2_i32_44 : i32 to vector<16x8xi32>
    %150 = arith.muli %149, %143 : vector<16x8xi32>
    %c1_i32_45 = arith.constant 1 : i32
    %151 = vector.broadcast %c1_i32_45 : i32 to vector<16x8xi32>
    %152 = arith.addi %150, %151 : vector<16x8xi32>
    %153 = arith.cmpi eq, %142, %152 : vector<16x8xi32>
    %154 = arith.extui %153 : vector<16x8xi1> to vector<16x8xi32>
    %155 = arith.sitofp %154 : vector<16x8xi32> to vector<16x8xf32>
    %cst_46 = arith.constant dense<0.000000e+00> : vector<16x8xf32>
    %156 = tpu.matmul %141, %148, %cst_46 {dimension_numbers = #tpu.dot_dimension_numbers<[1], [0], [0], [1], [0, 0, 1, 1], [], []>} : vector<16x16xf32>, vector<16x8xf32>, vector<16x8xf32> -> vector<16x8xf32>
    %cst_47 = arith.constant dense<0.000000e+00> : vector<16x8xf32>
    %157 = tpu.matmul %141, %155, %cst_47 {dimension_numbers = #tpu.dot_dimension_numbers<[1], [0], [0], [1], [0, 0, 1, 1], [], []>} : vector<16x16xf32>, vector<16x8xf32>, vector<16x8xf32> -> vector<16x8xf32>
    %158 = arith.maximumf %156, %157 : vector<16x8xf32>
    %159 = math.tanh %158 : vector<16x8xf32>
    %160 = vector.extract_strided_slice %159 {offsets = [0, 7], sizes = [16, 1], strides = [1, 1]} : vector<16x8xf32> to vector<16x1xf32>
    %161 = vector.extract_strided_slice %159 {offsets = [0, 0], sizes = [16, 7], strides = [1, 1]} : vector<16x8xf32> to vector<16x7xf32>
    %162 = tpu.concatenate %160, %161 in 1 : vector<16x1xf32>, vector<16x7xf32> -> vector<16x8xf32>
    %163 = vector.extract_strided_slice %159 {offsets = [0, 1], sizes = [16, 7], strides = [1, 1]} : vector<16x8xf32> to vector<16x7xf32>
    %164 = vector.extract_strided_slice %159 {offsets = [0, 0], sizes = [16, 1], strides = [1, 1]} : vector<16x8xf32> to vector<16x1xf32>
    %165 = tpu.concatenate %163, %164 in 1 : vector<16x7xf32>, vector<16x1xf32> -> vector<16x8xf32>
    %c0_48 = arith.constant 0 : index
    %c0_49 = arith.constant 0 : index
    %166 = vector.load %arg14[%c0_48, %c0_49] : memref<16x48xf32, #tpu.memory_space<vmem>>, vector<16x48xf32>
    %167 = tpu.concatenate %162, %159, %165 in 0 : vector<16x8xf32>, vector<16x8xf32>, vector<16x8xf32> -> vector<48x8xf32>
    %cst_50 = arith.constant dense<0.000000e+00> : vector<16x8xf32>
    %168 = tpu.matmul %166, %167, %cst_50 {dimension_numbers = #tpu.dot_dimension_numbers<[1], [0], [0], [1], [0, 0, 1, 1], [], []>} : vector<16x48xf32>, vector<48x8xf32>, vector<16x8xf32> -> vector<16x8xf32>
    %c0_51 = arith.constant 0 : index
    %c0_52 = arith.constant 0 : index
    %169 = vector.load %arg15[%c0_51, %c0_52] : memref<16x1xf32, #tpu.memory_space<vmem>>, vector<16x1xf32>
    %170 = vector.broadcast %169 : vector<16x1xf32> to vector<16x8xf32>
    %171 = arith.addf %168, %170 : vector<16x8xf32>
    %172 = math.tanh %171 : vector<16x8xf32>
    %173 = vector.extract_strided_slice %172 {offsets = [0, 7], sizes = [16, 1], strides = [1, 1]} : vector<16x8xf32> to vector<16x1xf32>
    %174 = vector.extract_strided_slice %172 {offsets = [0, 0], sizes = [16, 7], strides = [1, 1]} : vector<16x8xf32> to vector<16x7xf32>
    %175 = tpu.concatenate %173, %174 in 1 : vector<16x1xf32>, vector<16x7xf32> -> vector<16x8xf32>
    %176 = vector.extract_strided_slice %172 {offsets = [0, 1], sizes = [16, 7], strides = [1, 1]} : vector<16x8xf32> to vector<16x7xf32>
    %177 = vector.extract_strided_slice %172 {offsets = [0, 0], sizes = [16, 1], strides = [1, 1]} : vector<16x8xf32> to vector<16x1xf32>
    %178 = tpu.concatenate %176, %177 in 1 : vector<16x7xf32>, vector<16x1xf32> -> vector<16x8xf32>
    %c0_53 = arith.constant 0 : index
    %c0_54 = arith.constant 0 : index
    %179 = vector.load %arg16[%c0_53, %c0_54] : memref<16x48xf32, #tpu.memory_space<vmem>>, vector<16x48xf32>
    %180 = tpu.concatenate %175, %172, %178 in 0 : vector<16x8xf32>, vector<16x8xf32>, vector<16x8xf32> -> vector<48x8xf32>
    %cst_55 = arith.constant dense<0.000000e+00> : vector<16x8xf32>
    %181 = tpu.matmul %179, %180, %cst_55 {dimension_numbers = #tpu.dot_dimension_numbers<[1], [0], [0], [1], [0, 0, 1, 1], [], []>} : vector<16x48xf32>, vector<48x8xf32>, vector<16x8xf32> -> vector<16x8xf32>
    %c0_56 = arith.constant 0 : index
    %c0_57 = arith.constant 0 : index
    %182 = vector.load %arg17[%c0_56, %c0_57] : memref<16x1xf32, #tpu.memory_space<vmem>>, vector<16x1xf32>
    %183 = vector.broadcast %182 : vector<16x1xf32> to vector<16x8xf32>
    %184 = arith.addf %181, %183 : vector<16x8xf32>
    %185 = tpu.iota {dimensions = array<i32: 0>} : vector<8x4xi32>
    %186 = tpu.iota {dimensions = array<i32: 1>} : vector<8x4xi32>
    %c2_i32_58 = arith.constant 2 : i32
    %187 = vector.broadcast %c2_i32_58 : i32 to vector<8x4xi32>
    %188 = arith.muli %187, %186 : vector<8x4xi32>
    %189 = arith.cmpi eq, %185, %188 : vector<8x4xi32>
    %190 = arith.extui %189 : vector<8x4xi1> to vector<8x4xi32>
    %191 = arith.sitofp %190 : vector<8x4xi32> to vector<8x4xf32>
    %c2_i32_59 = arith.constant 2 : i32
    %192 = vector.broadcast %c2_i32_59 : i32 to vector<8x4xi32>
    %193 = arith.muli %192, %186 : vector<8x4xi32>
    %c1_i32_60 = arith.constant 1 : i32
    %194 = vector.broadcast %c1_i32_60 : i32 to vector<8x4xi32>
    %195 = arith.addi %193, %194 : vector<8x4xi32>
    %196 = arith.cmpi eq, %185, %195 : vector<8x4xi32>
    %197 = arith.extui %196 : vector<8x4xi1> to vector<8x4xi32>
    %198 = arith.sitofp %197 : vector<8x4xi32> to vector<8x4xf32>
    %cst_61 = arith.constant dense<0.000000e+00> : vector<16x4xf32>
    %199 = tpu.matmul %184, %191, %cst_61 {dimension_numbers = #tpu.dot_dimension_numbers<[1], [0], [0], [1], [0, 0, 1, 1], [], []>} : vector<16x8xf32>, vector<8x4xf32>, vector<16x4xf32> -> vector<16x4xf32>
    %cst_62 = arith.constant dense<0.000000e+00> : vector<16x4xf32>
    %200 = tpu.matmul %184, %198, %cst_62 {dimension_numbers = #tpu.dot_dimension_numbers<[1], [0], [0], [1], [0, 0, 1, 1], [], []>} : vector<16x8xf32>, vector<8x4xf32>, vector<16x4xf32> -> vector<16x4xf32>
    %201 = arith.maximumf %199, %200 : vector<16x4xf32>
    %202 = math.tanh %201 : vector<16x4xf32>
    %203 = vector.extract_strided_slice %202 {offsets = [0, 0], sizes = [1, 4], strides = [1, 1]} : vector<16x4xf32> to vector<1x4xf32>
    %204 = vector.extract_strided_slice %202 {offsets = [1, 0], sizes = [1, 4], strides = [1, 1]} : vector<16x4xf32> to vector<1x4xf32>
    %205 = vector.extract_strided_slice %202 {offsets = [2, 0], sizes = [1, 4], strides = [1, 1]} : vector<16x4xf32> to vector<1x4xf32>
    %206 = vector.extract_strided_slice %202 {offsets = [3, 0], sizes = [1, 4], strides = [1, 1]} : vector<16x4xf32> to vector<1x4xf32>
    %207 = vector.extract_strided_slice %202 {offsets = [4, 0], sizes = [1, 4], strides = [1, 1]} : vector<16x4xf32> to vector<1x4xf32>
    %208 = vector.extract_strided_slice %202 {offsets = [5, 0], sizes = [1, 4], strides = [1, 1]} : vector<16x4xf32> to vector<1x4xf32>
    %209 = vector.extract_strided_slice %202 {offsets = [6, 0], sizes = [1, 4], strides = [1, 1]} : vector<16x4xf32> to vector<1x4xf32>
    %210 = vector.extract_strided_slice %202 {offsets = [7, 0], sizes = [1, 4], strides = [1, 1]} : vector<16x4xf32> to vector<1x4xf32>
    %211 = vector.extract_strided_slice %202 {offsets = [8, 0], sizes = [1, 4], strides = [1, 1]} : vector<16x4xf32> to vector<1x4xf32>
    %212 = vector.extract_strided_slice %202 {offsets = [9, 0], sizes = [1, 4], strides = [1, 1]} : vector<16x4xf32> to vector<1x4xf32>
    %213 = vector.extract_strided_slice %202 {offsets = [10, 0], sizes = [1, 4], strides = [1, 1]} : vector<16x4xf32> to vector<1x4xf32>
    %214 = vector.extract_strided_slice %202 {offsets = [11, 0], sizes = [1, 4], strides = [1, 1]} : vector<16x4xf32> to vector<1x4xf32>
    %215 = vector.extract_strided_slice %202 {offsets = [12, 0], sizes = [1, 4], strides = [1, 1]} : vector<16x4xf32> to vector<1x4xf32>
    %216 = vector.extract_strided_slice %202 {offsets = [13, 0], sizes = [1, 4], strides = [1, 1]} : vector<16x4xf32> to vector<1x4xf32>
    %217 = vector.extract_strided_slice %202 {offsets = [14, 0], sizes = [1, 4], strides = [1, 1]} : vector<16x4xf32> to vector<1x4xf32>
    %218 = vector.extract_strided_slice %202 {offsets = [15, 0], sizes = [1, 4], strides = [1, 1]} : vector<16x4xf32> to vector<1x4xf32>
    %219 = tpu.concatenate %203, %204, %205, %206, %207, %208, %209, %210, %211, %212, %213, %214, %215, %216, %217, %218 in 1 : vector<1x4xf32>, vector<1x4xf32>, vector<1x4xf32>, vector<1x4xf32>, vector<1x4xf32>, vector<1x4xf32>, vector<1x4xf32>, vector<1x4xf32>, vector<1x4xf32>, vector<1x4xf32>, vector<1x4xf32>, vector<1x4xf32>, vector<1x4xf32>, vector<1x4xf32>, vector<1x4xf32>, vector<1x4xf32> -> vector<1x64xf32>
    %c0_63 = arith.constant 0 : index
    %c0_64 = arith.constant 0 : index
    %220 = vector.load %arg18[%c0_63, %c0_64] : memref<64x32xf32, #tpu.memory_space<vmem>>, vector<64x32xf32>
    %cst_65 = arith.constant dense<0.000000e+00> : vector<1x32xf32>
    %221 = tpu.matmul %219, %220, %cst_65 {dimension_numbers = #tpu.dot_dimension_numbers<[1], [0], [0], [1], [0, 0, 1, 1], [], []>} : vector<1x64xf32>, vector<64x32xf32>, vector<1x32xf32> -> vector<1x32xf32>
    %c0_66 = arith.constant 0 : index
    %c0_67 = arith.constant 0 : index
    %222 = vector.load %arg19[%c0_66, %c0_67] : memref<1x32xf32, #tpu.memory_space<vmem>>, vector<1x32xf32>
    %223 = arith.addf %221, %222 : vector<1x32xf32>
    %224 = math.tanh %223 : vector<1x32xf32>
    %c0_68 = arith.constant 0 : index
    %c0_69 = arith.constant 0 : index
    %225 = vector.load %arg20[%c0_68, %c0_69] : memref<32x16xf32, #tpu.memory_space<vmem>>, vector<32x16xf32>
    %cst_70 = arith.constant dense<0.000000e+00> : vector<1x16xf32>
    %226 = tpu.matmul %224, %225, %cst_70 {dimension_numbers = #tpu.dot_dimension_numbers<[1], [0], [0], [1], [0, 0, 1, 1], [], []>} : vector<1x32xf32>, vector<32x16xf32>, vector<1x16xf32> -> vector<1x16xf32>
    %c0_71 = arith.constant 0 : index
    %c0_72 = arith.constant 0 : index
    %227 = vector.load %arg21[%c0_71, %c0_72] : memref<1x16xf32, #tpu.memory_space<vmem>>, vector<1x16xf32>
    %228 = arith.addf %226, %227 : vector<1x16xf32>
    %229 = math.tanh %228 : vector<1x16xf32>
    %c0_73 = arith.constant 0 : index
    %c0_74 = arith.constant 0 : index
    %230 = vector.load %arg22[%c0_73, %c0_74] : memref<16x17xf32, #tpu.memory_space<vmem>>, vector<16x17xf32>
    %cst_75 = arith.constant dense<0.000000e+00> : vector<1x17xf32>
    %231 = tpu.matmul %229, %230, %cst_75 {dimension_numbers = #tpu.dot_dimension_numbers<[1], [0], [0], [1], [0, 0, 1, 1], [], []>} : vector<1x16xf32>, vector<16x17xf32>, vector<1x17xf32> -> vector<1x17xf32>
    %c0_76 = arith.constant 0 : index
    %c0_77 = arith.constant 0 : index
    %232 = vector.load %arg23[%c0_76, %c0_77] : memref<1x17xf32, #tpu.memory_space<vmem>>, vector<1x17xf32>
    %233 = arith.addf %231, %232 : vector<1x17xf32>
    %c0_78 = arith.constant 0 : index
    %c0_79 = arith.constant 0 : index
    %c0_80 = arith.constant 0 : index
    %234 = vector.load %arg24[%c0_78, %c0_79, %c0_80] : memref<1x1x17xf32, #tpu.memory_space<vmem>>, vector<1x1x17xf32>
    %235 = vector.shape_cast %234 : vector<1x1x17xf32> to vector<1x17xf32>
    %236 = vector.shape_cast %233 : vector<1x17xf32> to vector<1x1x17xf32>
    tpu.vector_store %arg24[%c0_78, %c0_79, %c0_80], %236 {strides = array<i32>} : memref<1x1x17xf32, #tpu.memory_space<vmem>>, vector<1x1x17xf32>,
    return
  }
  func.func @transform_0(%arg0: i32) -> (i32, i32, i32) {
    %c0_i32 = arith.constant 0 : i32
    %c0_i32_0 = arith.constant 0 : i32
    %c0_i32_1 = arith.constant 0 : i32
    return %arg0, %c0_i32, %c0_i32_0 : i32, i32, i32
  }
  func.func @transform_1(%arg0: i32) -> (i32, i32) {
    %c0_i32 = arith.constant 0 : i32
    %c0_i32_0 = arith.constant 0 : i32
    %c0_i32_1 = arith.constant 0 : i32
    return %c0_i32, %c0_i32_0 : i32, i32
  }
  func.func @transform_2(%arg0: i32) -> (i32, i32) {
    %c0_i32 = arith.constant 0 : i32
    %c0_i32_0 = arith.constant 0 : i32
    %c0_i32_1 = arith.constant 0 : i32
    return %c0_i32, %c0_i32_0 : i32, i32
  }
  func.func @transform_3(%arg0: i32) -> (i32, i32) {
    %c0_i32 = arith.constant 0 : i32
    %c0_i32_0 = arith.constant 0 : i32
    %c0_i32_1 = arith.constant 0 : i32
    return %c0_i32, %c0_i32_0 : i32, i32
  }
  func.func @transform_4(%arg0: i32) -> (i32, i32) {
    %c0_i32 = arith.constant 0 : i32
    %c0_i32_0 = arith.constant 0 : i32
    %c0_i32_1 = arith.constant 0 : i32
    return %c0_i32, %c0_i32_0 : i32, i32
  }
  func.func @transform_5(%arg0: i32) -> (i32, i32) {
    %c0_i32 = arith.constant 0 : i32
    %c0_i32_0 = arith.constant 0 : i32
    %c0_i32_1 = arith.constant 0 : i32
    return %c0_i32, %c0_i32_0 : i32, i32
  }
  func.func @transform_6(%arg0: i32) -> (i32, i32) {
    %c0_i32 = arith.constant 0 : i32
    %c0_i32_0 = arith.constant 0 : i32
    %c0_i32_1 = arith.constant 0 : i32
    return %c0_i32, %c0_i32_0 : i32, i32
  }
  func.func @transform_7(%arg0: i32) -> (i32, i32) {
    %c0_i32 = arith.constant 0 : i32
    %c0_i32_0 = arith.constant 0 : i32
    %c0_i32_1 = arith.constant 0 : i32
    return %c0_i32, %c0_i32_0 : i32, i32
  }
  func.func @transform_8(%arg0: i32) -> (i32, i32) {
    %c0_i32 = arith.constant 0 : i32
    %c0_i32_0 = arith.constant 0 : i32
    %c0_i32_1 = arith.constant 0 : i32
    return %c0_i32, %c0_i32_0 : i32, i32
  }
  func.func @transform_9(%arg0: i32) -> (i32, i32) {
    %c0_i32 = arith.constant 0 : i32
    %c0_i32_0 = arith.constant 0 : i32
    %c0_i32_1 = arith.constant 0 : i32
    return %c0_i32, %c0_i32_0 : i32, i32
  }
  func.func @transform_10(%arg0: i32) -> (i32, i32) {
    %c0_i32 = arith.constant 0 : i32
    %c0_i32_0 = arith.constant 0 : i32
    %c0_i32_1 = arith.constant 0 : i32
    return %c0_i32, %c0_i32_0 : i32, i32
  }
  func.func @transform_11(%arg0: i32) -> (i32, i32) {
    %c0_i32 = arith.constant 0 : i32
    %c0_i32_0 = arith.constant 0 : i32
    %c0_i32_1 = arith.constant 0 : i32
    return %c0_i32, %c0_i32_0 : i32, i32
  }
  func.func @transform_12(%arg0: i32) -> (i32, i32) {
    %c0_i32 = arith.constant 0 : i32
    %c0_i32_0 = arith.constant 0 : i32
    %c0_i32_1 = arith.constant 0 : i32
    return %c0_i32, %c0_i32_0 : i32, i32
  }
  func.func @transform_13(%arg0: i32) -> (i32, i32) {
    %c0_i32 = arith.constant 0 : i32
    %c0_i32_0 = arith.constant 0 : i32
    %c0_i32_1 = arith.constant 0 : i32
    return %c0_i32, %c0_i32_0 : i32, i32
  }
  func.func @transform_14(%arg0: i32) -> (i32, i32) {
    %c0_i32 = arith.constant 0 : i32
    %c0_i32_0 = arith.constant 0 : i32
    %c0_i32_1 = arith.constant 0 : i32
    return %c0_i32, %c0_i32_0 : i32, i32
  }
  func.func @transform_15(%arg0: i32) -> (i32, i32) {
    %c0_i32 = arith.constant 0 : i32
    %c0_i32_0 = arith.constant 0 : i32
    %c0_i32_1 = arith.constant 0 : i32
    return %c0_i32, %c0_i32_0 : i32, i32
  }
  func.func @transform_16(%arg0: i32) -> (i32, i32) {
    %c0_i32 = arith.constant 0 : i32
    %c0_i32_0 = arith.constant 0 : i32
    %c0_i32_1 = arith.constant 0 : i32
    return %c0_i32, %c0_i32_0 : i32, i32
  }
  func.func @transform_17(%arg0: i32) -> (i32, i32) {
    %c0_i32 = arith.constant 0 : i32
    %c0_i32_0 = arith.constant 0 : i32
    %c0_i32_1 = arith.constant 0 : i32
    return %c0_i32, %c0_i32_0 : i32, i32
  }
  func.func @transform_18(%arg0: i32) -> (i32, i32) {
    %c0_i32 = arith.constant 0 : i32
    %c0_i32_0 = arith.constant 0 : i32
    %c0_i32_1 = arith.constant 0 : i32
    return %c0_i32, %c0_i32_0 : i32, i32
  }
  func.func @transform_19(%arg0: i32) -> (i32, i32) {
    %c0_i32 = arith.constant 0 : i32
    %c0_i32_0 = arith.constant 0 : i32
    %c0_i32_1 = arith.constant 0 : i32
    return %c0_i32, %c0_i32_0 : i32, i32
  }
  func.func @transform_20(%arg0: i32) -> (i32, i32) {
    %c0_i32 = arith.constant 0 : i32
    %c0_i32_0 = arith.constant 0 : i32
    %c0_i32_1 = arith.constant 0 : i32
    return %c0_i32, %c0_i32_0 : i32, i32
  }
  func.func @transform_21(%arg0: i32) -> (i32, i32) {
    %c0_i32 = arith.constant 0 : i32
    %c0_i32_0 = arith.constant 0 : i32
    %c0_i32_1 = arith.constant 0 : i32
    return %c0_i32, %c0_i32_0 : i32, i32
  }
  func.func @transform_22(%arg0: i32) -> (i32, i32) {
    %c0_i32 = arith.constant 0 : i32
    %c0_i32_0 = arith.constant 0 : i32
    %c0_i32_1 = arith.constant 0 : i32
    return %c0_i32, %c0_i32_0 : i32, i32
  }
  func.func @transform_23(%arg0: i32) -> (i32, i32, i32) {
    %c0_i32 = arith.constant 0 : i32
    %c0_i32_0 = arith.constant 0 : i32
    %c0_i32_1 = arith.constant 0 : i32
    return %arg0, %c0_i32, %c0_i32_0 : i32, i32, i32
  }
}

</mosaic_0001>

<llo_original>
// kernel: vgg11_forward.1
$region0: #{vgg11_forward.1}
  #allocation0 [shape = 'u32[]', space=smem, size = 0x4, offset = 0x4, fixed_abs, tag = 'smem constant byte address 0x4 - core index']
  #allocation1 [shape = 'u32[72,128]{1,0:T(1,128)}', space=vmem, size = 0x9000, scoped, tag = 'internal scratch']
  %s0 = inlined_call_operand.vmem [shape: f32[2,1,128], index: 0, kind: input, shape index: {}]
  %s1 = inlined_call_operand.vmem [shape: f32[4,3], index: 1, kind: input, shape index: {}]
  %s2 = inlined_call_operand.vmem [shape: f32[4,1], index: 2, kind: input, shape index: {}]
  %s3 = inlined_call_operand.vmem [shape: f32[8,12], index: 3, kind: input, shape index: {}]
  %s4 = inlined_call_operand.vmem [shape: f32[8,1], index: 4, kind: input, shape index: {}]
  %s5 = inlined_call_operand.vmem [shape: f32[16,24], index: 5, kind: input, shape index: {}]
  %s6 = inlined_call_operand.vmem [shape: f32[16,1], index: 6, kind: input, shape index: {}]
  %s7 = inlined_call_operand.vmem [shape: f32[16,48], index: 7, kind: input, shape index: {}]
  %s8 = inlined_call_operand.vmem [shape: f32[16,1], index: 8, kind: input, shape index: {}]
  %s9 = inlined_call_operand.vmem [shape: f32[16,48], index: 9, kind: input, shape index: {}]
  %s10 = inlined_call_operand.vmem [shape: f32[16,1], index: 10, kind: input, shape index: {}]
  %s11 = inlined_call_operand.vmem [shape: f32[16,48], index: 11, kind: input, shape index: {}]
  %s12 = inlined_call_operand.vmem [shape: f32[16,1], index: 12, kind: input, shape index: {}]
  %s13 = inlined_call_operand.vmem [shape: f32[16,48], index: 13, kind: input, shape index: {}]
  %s14 = inlined_call_operand.vmem [shape: f32[16,1], index: 14, kind: input, shape index: {}]
  %s15 = inlined_call_operand.vmem [shape: f32[16,48], index: 15, kind: input, shape index: {}]
  %s16 = inlined_call_operand.vmem [shape: f32[16,1], index: 16, kind: input, shape index: {}]
  %s17 = inlined_call_operand.vmem [shape: f32[64,32], index: 17, kind: input, shape index: {}]
  %s18 = inlined_call_operand.vmem [shape: f32[1,32], index: 18, kind: input, shape index: {}]
  %s19 = inlined_call_operand.vmem [shape: f32[32,16], index: 19, kind: input, shape index: {}]
  %s20 = inlined_call_operand.vmem [shape: f32[1,16], index: 20, kind: input, shape index: {}]
  %s21 = inlined_call_operand.vmem [shape: f32[16,17], index: 21, kind: input, shape index: {}]
  %s22 = inlined_call_operand.vmem [shape: f32[1,17], index: 22, kind: input, shape index: {}]
  %s23 = inlined_call_operand.hbm [shape: f32[2,1,17], index: 23, kind: output, shape index: {}]
  %s24 = sld [smem:[#allocation0]]
  $region125: #{vgg11_forward.1} parent=0
    _
  %s26 = ssub.s32 1, %s24
  %s27 = scalar_select 0, %s26, %s24
  $region1: #{vgg11_forward.1} parent=0
    #allocation2 [shape = 'u8[1024]{0}', space=vmem, size = 0x400, scoped, tag = 'output window, operand 0']
    #allocation3 [shape = 's32[2]{0}', space=sflag, size = 0x8, scoped, tag = 'scoped memory for vgg11_forward.1']
    %28 = vsyncpa [#allocation3], 0
    %s29 = scalar_lea.sflag [#allocation3], 1
    %30 = vsyncpa %s29, 0
    loop: start=0, step=1, limit=4
    $region2: #{vgg11_forward.1} parent=1 // loop_pre_header
      _
    $region3: #{vgg11_forward.1} parent=1 // loop_header
      %s32 = sphi 0, %s36
      %p33 = scmp.ge.s32.totalorder %s32, 4
      %s42 = sphi 0, %s44
      %s45 = sphi 0, %s42
      %s46 = sphi 0, %s45
      %s62 = sphi 0, %s46
      %s66 = sphi 0, %s66
      %s68 = sphi 0, %s66
      %s69 = sphi 0, %s68
      %s83 = sphi 0, %s69
      %s87 = sphi 0, %s87
      %s89 = sphi 0, %s87
      %s90 = sphi 0, %s89
      %s104 = sphi 0, %s90
      %s108 = sphi 0, %s108
      %s110 = sphi 0, %s108
      %s111 = sphi 0, %s110
      %s125 = sphi 0, %s111
      %s129 = sphi 0, %s129
      %s131 = sphi 0, %s129
      %s132 = sphi 0, %s131
      %s146 = sphi 0, %s132
      %s150 = sphi 0, %s150
      %s152 = sphi 0, %s150
      %s153 = sphi 0, %s152
      %s167 = sphi 0, %s153
      %s171 = sphi 0, %s171
      %s173 = sphi 0, %s171
      %s174 = sphi 0, %s173
      %s188 = sphi 0, %s174
      %s192 = sphi 0, %s192
      %s194 = sphi 0, %s192
      %s195 = sphi 0, %s194
      %s209 = sphi 0, %s195
      %s213 = sphi 0, %s213
      %s215 = sphi 0, %s213
      %s216 = sphi 0, %s215
      %s230 = sphi 0, %s216
      %s234 = sphi 0, %s234
      %s236 = sphi 0, %s234
      %s237 = sphi 0, %s236
      %s251 = sphi 0, %s237
      %s255 = sphi 0, %s255
      %s257 = sphi 0, %s255
      %s258 = sphi 0, %s257
      %s272 = sphi 0, %s258
      %s276 = sphi 0, %s276
      %s278 = sphi 0, %s276
      %s279 = sphi 0, %s278
      %s293 = sphi 0, %s279
      %s297 = sphi 0, %s297
      %s299 = sphi 0, %s297
      %s300 = sphi 0, %s299
      %s314 = sphi 0, %s300
      %s318 = sphi 0, %s318
      %s320 = sphi 0, %s318
      %s321 = sphi 0, %s320
      %s335 = sphi 0, %s321
      %s339 = sphi 0, %s339
      %s341 = sphi 0, %s339
      %s342 = sphi 0, %s341
      %s356 = sphi 0, %s342
      %s360 = sphi 0, %s360
      %s362 = sphi 0, %s360
      %s363 = sphi 0, %s362
      %s377 = sphi 0, %s363
      %s381 = sphi 0, %s381
      %s383 = sphi 0, %s381
      %s384 = sphi 0, %s383
      %s398 = sphi 0, %s384
      %s402 = sphi 0, %s402
      %s404 = sphi 0, %s402
      %s405 = sphi 0, %s404
      %s419 = sphi 0, %s405
      %s423 = sphi 0, %s423
      %s425 = sphi 0, %s423
      %s426 = sphi 0, %s425
      %s440 = sphi 0, %s426
      %s444 = sphi 0, %s444
      %s446 = sphi 0, %s444
      %s447 = sphi 0, %s446
      %s461 = sphi 0, %s447
      %s465 = sphi 0, %s465
      %s467 = sphi 0, %s465
      %s468 = sphi 0, %s467
      %s482 = sphi 0, %s468
      %s486 = sphi 0, %s486
      %s488 = sphi 0, %s486
      %s489 = sphi 0, %s488
      %s503 = sphi 0, %s489
      %s507 = sphi 0, %s507
      %s509 = sphi 0, %s507
      %s510 = sphi 0, %s509
      %s524 = sphi 0, %s510
      %s530 = sphi 0, %s532
      %s533 = sphi 0, %s530
      %s534 = sphi 0, %s533
      %s550 = sphi 0, %s534
    $region4: #{vgg11_forward.1} parent=1 // loop_header_branch
      %35 = sbr.rel (%p33) target = $region8
    $region5: #{vgg11_forward.1} parent=1 // loop_body
      %s37 = ssub.s32 %s32, 1
      %s38 = ssub.s32 %s32, 2
      %s39 = sadd.s32 %s32, 1
      %s40 = ssub.s32 %s32, %s39
      %p41 = scmp.eq.s32.totalorder %s40, 0
      %s43 = sadd.s32 %s42, 1
      %s44 = scalar_select %p41, %s42, %s43
      %p47 = pneg %p41
      %p48 = scmp.eq.s32.totalorder %s32, 1
      %p49 = por %p47, %p48
      %p50 = scmp.ne.s32.totalorder %s42, %s45
      %p51 = scmp.eq.s32.totalorder %s32, 0
      %p52 = por %p50, %p51
      %p53 = scmp.ne.s32.totalorder %s42, %s45
      %p54 = scmp.eq.s32.totalorder %s37, 1
      %p55 = por %p53, %p54
      %p56 = scmp.ne.s32.totalorder %s45, %s46
      %p57 = scmp.eq.s32.totalorder %s37, 0
      %p58 = por %p56, %p57
      %p59 = scmp.ne.s32.totalorder %s45, %s46
      %p60 = scmp.eq.s32.totalorder %s38, 1
      %p61 = por %p59, %p60
      %p63 = scmp.ne.s32.totalorder %s46, %s62
      %p64 = scmp.eq.s32.totalorder %s38, 0
      %p65 = por %p63, %p64
      %s67 = sadd.s32 %s66, 1
      %p70 = scmp.eq.s32.totalorder %s32, 1
      %p71 = scmp.ne.s32.totalorder %s66, %s68
      %p72 = scmp.eq.s32.totalorder %s32, 0
      %p73 = por %p71, %p72
      %p74 = scmp.ne.s32.totalorder %s66, %s68
      %p75 = scmp.eq.s32.totalorder %s37, 1
      %p76 = por %p74, %p75
      %p77 = scmp.ne.s32.totalorder %s68, %s69
      %p78 = scmp.eq.s32.totalorder %s37, 0
      %p79 = por %p77, %p78
      %p80 = scmp.ne.s32.totalorder %s68, %s69
      %p81 = scmp.eq.s32.totalorder %s38, 1
      %p82 = por %p80, %p81
      %p84 = scmp.ne.s32.totalorder %s69, %s83
      %p85 = scmp.eq.s32.totalorder %s38, 0
      %p86 = por %p84, %p85
      %s88 = sadd.s32 %s87, 1
      %p91 = scmp.eq.s32.totalorder %s32, 1
      %p92 = scmp.ne.s32.totalorder %s87, %s89
      %p93 = scmp.eq.s32.totalorder %s32, 0
      %p94 = por %p92, %p93
      %p95 = scmp.ne.s32.totalorder %s87, %s89
      %p96 = scmp.eq.s32.totalorder %s37, 1
      %p97 = por %p95, %p96
      %p98 = scmp.ne.s32.totalorder %s89, %s90
      %p99 = scmp.eq.s32.totalorder %s37, 0
      %p100 = por %p98, %p99
      %p101 = scmp.ne.s32.totalorder %s89, %s90
      %p102 = scmp.eq.s32.totalorder %s38, 1
      %p103 = por %p101, %p102
      %p105 = scmp.ne.s32.totalorder %s90, %s104
      %p106 = scmp.eq.s32.totalorder %s38, 0
      %p107 = por %p105, %p106
      %s109 = sadd.s32 %s108, 1
      %p112 = scmp.eq.s32.totalorder %s32, 1
      %p113 = scmp.ne.s32.totalorder %s108, %s110
      %p114 = scmp.eq.s32.totalorder %s32, 0
      %p115 = por %p113, %p114
      %p116 = scmp.ne.s32.totalorder %s108, %s110
      %p117 = scmp.eq.s32.totalorder %s37, 1
      %p118 = por %p116, %p117
      %p119 = scmp.ne.s32.totalorder %s110, %s111
      %p120 = scmp.eq.s32.totalorder %s37, 0
      %p121 = por %p119, %p120
      %p122 = scmp.ne.s32.totalorder %s110, %s111
      %p123 = scmp.eq.s32.totalorder %s38, 1
      %p124 = por %p122, %p123
      %p126 = scmp.ne.s32.totalorder %s111, %s125
      %p127 = scmp.eq.s32.totalorder %s38, 0
      %p128 = por %p126, %p127
      %s130 = sadd.s32 %s129, 1
      %p133 = scmp.eq.s32.totalorder %s32, 1
      %p134 = scmp.ne.s32.totalorder %s129, %s131
      %p135 = scmp.eq.s32.totalorder %s32, 0
      %p136 = por %p134, %p135
      %p137 = scmp.ne.s32.totalorder %s129, %s131
      %p138 = scmp.eq.s32.totalorder %s37, 1
      %p139 = por %p137, %p138
      %p140 = scmp.ne.s32.totalorder %s131, %s132
      %p141 = scmp.eq.s32.totalorder %s37, 0
      %p142 = por %p140, %p141
      %p143 = scmp.ne.s32.totalorder %s131, %s132
      %p144 = scmp.eq.s32.totalorder %s38, 1
      %p145 = por %p143, %p144
      %p147 = scmp.ne.s32.totalorder %s132, %s146
      %p148 = scmp.eq.s32.totalorder %s38, 0
      %p149 = por %p147, %p148
      %s151 = sadd.s32 %s150, 1
      %p154 = scmp.eq.s32.totalorder %s32, 1
      %p155 = scmp.ne.s32.totalorder %s150, %s152
      %p156 = scmp.eq.s32.totalorder %s32, 0
      %p157 = por %p155, %p156
      %p158 = scmp.ne.s32.totalorder %s150, %s152
      %p159 = scmp.eq.s32.totalorder %s37, 1
      %p160 = por %p158, %p159
      %p161 = scmp.ne.s32.totalorder %s152, %s153
      %p162 = scmp.eq.s32.totalorder %s37, 0
      %p163 = por %p161, %p162
      %p164 = scmp.ne.s32.totalorder %s152, %s153
      %p165 = scmp.eq.s32.totalorder %s38, 1
      %p166 = por %p164, %p165
      %p168 = scmp.ne.s32.totalorder %s153, %s167
      %p169 = scmp.eq.s32.totalorder %s38, 0
      %p170 = por %p168, %p169
      %s172 = sadd.s32 %s171, 1
      %p175 = scmp.eq.s32.totalorder %s32, 1
      %p176 = scmp.ne.s32.totalorder %s171, %s173
      %p177 = scmp.eq.s32.totalorder %s32, 0
      %p178 = por %p176, %p177
      %p179 = scmp.ne.s32.totalorder %s171, %s173
      %p180 = scmp.eq.s32.totalorder %s37, 1
      %p181 = por %p179, %p180
      %p182 = scmp.ne.s32.totalorder %s173, %s174
      %p183 = scmp.eq.s32.totalorder %s37, 0
      %p184 = por %p182, %p183
      %p185 = scmp.ne.s32.totalorder %s173, %s174
      %p186 = scmp.eq.s32.totalorder %s38, 1
      %p187 = por %p185, %p186
      %p189 = scmp.ne.s32.totalorder %s174, %s188
      %p190 = scmp.eq.s32.totalorder %s38, 0
      %p191 = por %p189, %p190
      %s193 = sadd.s32 %s192, 1
      %p196 = scmp.eq.s32.totalorder %s32, 1
      %p197 = scmp.ne.s32.totalorder %s192, %s194
      %p198 = scmp.eq.s32.totalorder %s32, 0
      %p199 = por %p197, %p198
      %p200 = scmp.ne.s32.totalorder %s192, %s194
      %p201 = scmp.eq.s32.totalorder %s37, 1
      %p202 = por %p200, %p201
      %p203 = scmp.ne.s32.totalorder %s194, %s195
      %p204 = scmp.eq.s32.totalorder %s37, 0
      %p205 = por %p203, %p204
      %p206 = scmp.ne.s32.totalorder %s194, %s195
      %p207 = scmp.eq.s32.totalorder %s38, 1
      %p208 = por %p206, %p207
      %p210 = scmp.ne.s32.totalorder %s195, %s209
      %p211 = scmp.eq.s32.totalorder %s38, 0
      %p212 = por %p210, %p211
      %s214 = sadd.s32 %s213, 1
      %p217 = scmp.eq.s32.totalorder %s32, 1
      %p218 = scmp.ne.s32.totalorder %s213, %s215
      %p219 = scmp.eq.s32.totalorder %s32, 0
      %p220 = por %p218, %p219
      %p221 = scmp.ne.s32.totalorder %s213, %s215
      %p222 = scmp.eq.s32.totalorder %s37, 1
      %p223 = por %p221, %p222
      %p224 = scmp.ne.s32.totalorder %s215, %s216
      %p225 = scmp.eq.s32.totalorder %s37, 0
      %p226 = por %p224, %p225
      %p227 = scmp.ne.s32.totalorder %s215, %s216
      %p228 = scmp.eq.s32.totalorder %s38, 1
      %p229 = por %p227, %p228
      %p231 = scmp.ne.s32.totalorder %s216, %s230
      %p232 = scmp.eq.s32.totalorder %s38, 0
      %p233 = por %p231, %p232
      %s235 = sadd.s32 %s234, 1
      %p238 = scmp.eq.s32.totalorder %s32, 1
      %p239 = scmp.ne.s32.totalorder %s234, %s236
      %p240 = scmp.eq.s32.totalorder %s32, 0
      %p241 = por %p239, %p240
      %p242 = scmp.ne.s32.totalorder %s234, %s236
      %p243 = scmp.eq.s32.totalorder %s37, 1
      %p244 = por %p242, %p243
      %p245 = scmp.ne.s32.totalorder %s236, %s237
      %p246 = scmp.eq.s32.totalorder %s37, 0
      %p247 = por %p245, %p246
      %p248 = scmp.ne.s32.totalorder %s236, %s237
      %p249 = scmp.eq.s32.totalorder %s38, 1
      %p250 = por %p248, %p249
      %p252 = scmp.ne.s32.totalorder %s237, %s251
      %p253 = scmp.eq.s32.totalorder %s38, 0
      %p254 = por %p252, %p253
      %s256 = sadd.s32 %s255, 1
      %p259 = scmp.eq.s32.totalorder %s32, 1
      %p260 = scmp.ne.s32.totalorder %s255, %s257
      %p261 = scmp.eq.s32.totalorder %s32, 0
      %p262 = por %p260, %p261
      %p263 = scmp.ne.s32.totalorder %s255, %s257
      %p264 = scmp.eq.s32.totalorder %s37, 1
      %p265 = por %p263, %p264
      %p266 = scmp.ne.s32.totalorder %s257, %s258
      %p267 = scmp.eq.s32.totalorder %s37, 0
      %p268 = por %p266, %p267
      %p269 = scmp.ne.s32.totalorder %s257, %s258
      %p270 = scmp.eq.s32.totalorder %s38, 1
      %p271 = por %p269, %p270
      %p273 = scmp.ne.s32.totalorder %s258, %s272
      %p274 = scmp.eq.s32.totalorder %s38, 0
      %p275 = por %p273, %p274
      %s277 = sadd.s32 %s276, 1
      %p280 = scmp.eq.s32.totalorder %s32, 1
      %p281 = scmp.ne.s32.totalorder %s276, %s278
      %p282 = scmp.eq.s32.totalorder %s32, 0
      %p283 = por %p281, %p282
      %p284 = scmp.ne.s32.totalorder %s276, %s278
      %p285 = scmp.eq.s32.totalorder %s37, 1
      %p286 = por %p284, %p285
      %p287 = scmp.ne.s32.totalorder %s278, %s279
      %p288 = scmp.eq.s32.totalorder %s37, 0
      %p289 = por %p287, %p288
      %p290 = scmp.ne.s32.totalorder %s278, %s279
      %p291 = scmp.eq.s32.totalorder %s38, 1
      %p292 = por %p290, %p291
      %p294 = scmp.ne.s32.totalorder %s279, %s293
      %p295 = scmp.eq.s32.totalorder %s38, 0
      %p296 = por %p294, %p295
      %s298 = sadd.s32 %s297, 1
      %p301 = scmp.eq.s32.totalorder %s32, 1
      %p302 = scmp.ne.s32.totalorder %s297, %s299
      %p303 = scmp.eq.s32.totalorder %s32, 0
      %p304 = por %p302, %p303
      %p305 = scmp.ne.s32.totalorder %s297, %s299
      %p306 = scmp.eq.s32.totalorder %s37, 1
      %p307 = por %p305, %p306
      %p308 = scmp.ne.s32.totalorder %s299, %s300
      %p309 = scmp.eq.s32.totalorder %s37, 0
      %p310 = por %p308, %p309
      %p311 = scmp.ne.s32.totalorder %s299, %s300
      %p312 = scmp.eq.s32.totalorder %s38, 1
      %p313 = por %p311, %p312
      %p315 = scmp.ne.s32.totalorder %s300, %s314
      %p316 = scmp.eq.s32.totalorder %s38, 0
      %p317 = por %p315, %p316
      %s319 = sadd.s32 %s318, 1
      %p322 = scmp.eq.s32.totalorder %s32, 1
      %p323 = scmp.ne.s32.totalorder %s318, %s320
      %p324 = scmp.eq.s32.totalorder %s32, 0
      %p325 = por %p323, %p324
      %p326 = scmp.ne.s32.totalorder %s318, %s320
      %p327 = scmp.eq.s32.totalorder %s37, 1
      %p328 = por %p326, %p327
      %p329 = scmp.ne.s32.totalorder %s320, %s321
      %p330 = scmp.eq.s32.totalorder %s37, 0
      %p331 = por %p329, %p330
      %p332 = scmp.ne.s32.totalorder %s320, %s321
      %p333 = scmp.eq.s32.totalorder %s38, 1
      %p334 = por %p332, %p333
      %p336 = scmp.ne.s32.totalorder %s321, %s335
      %p337 = scmp.eq.s32.totalorder %s38, 0
      %p338 = por %p336, %p337
      %s340 = sadd.s32 %s339, 1
      %p343 = scmp.eq.s32.totalorder %s32, 1
      %p344 = scmp.ne.s32.totalorder %s339, %s341
      %p345 = scmp.eq.s32.totalorder %s32, 0
      %p346 = por %p344, %p345
      %p347 = scmp.ne.s32.totalorder %s339, %s341
      %p348 = scmp.eq.s32.totalorder %s37, 1
      %p349 = por %p347, %p348
      %p350 = scmp.ne.s32.totalorder %s341, %s342
      %p351 = scmp.eq.s32.totalorder %s37, 0
      %p352 = por %p350, %p351
      %p353 = scmp.ne.s32.totalorder %s341, %s342
      %p354 = scmp.eq.s32.totalorder %s38, 1
      %p355 = por %p353, %p354
      %p357 = scmp.ne.s32.totalorder %s342, %s356
      %p358 = scmp.eq.s32.totalorder %s38, 0
      %p359 = por %p357, %p358
      %s361 = sadd.s32 %s360, 1
      %p364 = scmp.eq.s32.totalorder %s32, 1
      %p365 = scmp.ne.s32.totalorder %s360, %s362
      %p366 = scmp.eq.s32.totalorder %s32, 0
      %p367 = por %p365, %p366
      %p368 = scmp.ne.s32.totalorder %s360, %s362
      %p369 = scmp.eq.s32.totalorder %s37, 1
      %p370 = por %p368, %p369
      %p371 = scmp.ne.s32.totalorder %s362, %s363
      %p372 = scmp.eq.s32.totalorder %s37, 0
      %p373 = por %p371, %p372
      %p374 = scmp.ne.s32.totalorder %s362, %s363
      %p375 = scmp.eq.s32.totalorder %s38, 1
      %p376 = por %p374, %p375
      %p378 = scmp.ne.s32.totalorder %s363, %s377
      %p379 = scmp.eq.s32.totalorder %s38, 0
      %p380 = por %p378, %p379
      %s382 = sadd.s32 %s381, 1
      %p385 = scmp.eq.s32.totalorder %s32, 1
      %p386 = scmp.ne.s32.totalorder %s381, %s383
      %p387 = scmp.eq.s32.totalorder %s32, 0
      %p388 = por %p386, %p387
      %p389 = scmp.ne.s32.totalorder %s381, %s383
      %p390 = scmp.eq.s32.totalorder %s37, 1
      %p391 = por %p389, %p390
      %p392 = scmp.ne.s32.totalorder %s383, %s384
      %p393 = scmp.eq.s32.totalorder %s37, 0
      %p394 = por %p392, %p393
      %p395 = scmp.ne.s32.totalorder %s383, %s384
      %p396 = scmp.eq.s32.totalorder %s38, 1
      %p397 = por %p395, %p396
      %p399 = scmp.ne.s32.totalorder %s384, %s398
      %p400 = scmp.eq.s32.totalorder %s38, 0
      %p401 = por %p399, %p400
      %s403 = sadd.s32 %s402, 1
      %p406 = scmp.eq.s32.totalorder %s32, 1
      %p407 = scmp.ne.s32.totalorder %s402, %s404
      %p408 = scmp.eq.s32.totalorder %s32, 0
      %p409 = por %p407, %p408
      %p410 = scmp.ne.s32.totalorder %s402, %s404
      %p411 = scmp.eq.s32.totalorder %s37, 1
      %p412 = por %p410, %p411
      %p413 = scmp.ne.s32.totalorder %s404, %s405
      %p414 = scmp.eq.s32.totalorder %s37, 0
      %p415 = por %p413, %p414
      %p416 = scmp.ne.s32.totalorder %s404, %s405
      %p417 = scmp.eq.s32.totalorder %s38, 1
      %p418 = por %p416, %p417
      %p420 = scmp.ne.s32.totalorder %s405, %s419
      %p421 = scmp.eq.s32.totalorder %s38, 0
      %p422 = por %p420, %p421
      %s424 = sadd.s32 %s423, 1
      %p427 = scmp.eq.s32.totalorder %s32, 1
      %p428 = scmp.ne.s32.totalorder %s423, %s425
      %p429 = scmp.eq.s32.totalorder %s32, 0
      %p430 = por %p428, %p429
      %p431 = scmp.ne.s32.totalorder %s423, %s425
      %p432 = scmp.eq.s32.totalorder %s37, 1
      %p433 = por %p431, %p432
      %p434 = scmp.ne.s32.totalorder %s425, %s426
      %p435 = scmp.eq.s32.totalorder %s37, 0
      %p436 = por %p434, %p435
      %p437 = scmp.ne.s32.totalorder %s425, %s426
      %p438 = scmp.eq.s32.totalorder %s38, 1
      %p439 = por %p437, %p438
      %p441 = scmp.ne.s32.totalorder %s426, %s440
      %p442 = scmp.eq.s32.totalorder %s38, 0
      %p443 = por %p441, %p442
      %s445 = sadd.s32 %s444, 1
      %p448 = scmp.eq.s32.totalorder %s32, 1
      %p449 = scmp.ne.s32.totalorder %s444, %s446
      %p450 = scmp.eq.s32.totalorder %s32, 0
      %p451 = por %p449, %p450
      %p452 = scmp.ne.s32.totalorder %s444, %s446
      %p453 = scmp.eq.s32.totalorder %s37, 1
      %p454 = por %p452, %p453
      %p455 = scmp.ne.s32.totalorder %s446, %s447
      %p456 = scmp.eq.s32.totalorder %s37, 0
      %p457 = por %p455, %p456
      %p458 = scmp.ne.s32.totalorder %s446, %s447
      %p459 = scmp.eq.s32.totalorder %s38, 1
      %p460 = por %p458, %p459
      %p462 = scmp.ne.s32.totalorder %s447, %s461
      %p463 = scmp.eq.s32.totalorder %s38, 0
      %p464 = por %p462, %p463
      %s466 = sadd.s32 %s465, 1
      %p469 = scmp.eq.s32.totalorder %s32, 1
      %p470 = scmp.ne.s32.totalorder %s465, %s467
      %p471 = scmp.eq.s32.totalorder %s32, 0
      %p472 = por %p470, %p471
      %p473 = scmp.ne.s32.totalorder %s465, %s467
      %p474 = scmp.eq.s32.totalorder %s37, 1
      %p475 = por %p473, %p474
      %p476 = scmp.ne.s32.totalorder %s467, %s468
      %p477 = scmp.eq.s32.totalorder %s37, 0
      %p478 = por %p476, %p477
      %p479 = scmp.ne.s32.totalorder %s467, %s468
      %p480 = scmp.eq.s32.totalorder %s38, 1
      %p481 = por %p479, %p480
      %p483 = scmp.ne.s32.totalorder %s468, %s482
      %p484 = scmp.eq.s32.totalorder %s38, 0
      %p485 = por %p483, %p484
      %s487 = sadd.s32 %s486, 1
      %p490 = scmp.eq.s32.totalorder %s32, 1
      %p491 = scmp.ne.s32.totalorder %s486, %s488
      %p492 = scmp.eq.s32.totalorder %s32, 0
      %p493 = por %p491, %p492
      %p494 = scmp.ne.s32.totalorder %s486, %s488
      %p495 = scmp.eq.s32.totalorder %s37, 1
      %p496 = por %p494, %p495
      %p497 = scmp.ne.s32.totalorder %s488, %s489
      %p498 = scmp.eq.s32.totalorder %s37, 0
      %p499 = por %p497, %p498
      %p500 = scmp.ne.s32.totalorder %s488, %s489
      %p501 = scmp.eq.s32.totalorder %s38, 1
      %p502 = por %p500, %p501
      %p504 = scmp.ne.s32.totalorder %s489, %s503
      %p505 = scmp.eq.s32.totalorder %s38, 0
      %p506 = por %p504, %p505
      %s508 = sadd.s32 %s507, 1
      %p511 = scmp.eq.s32.totalorder %s32, 1
      %p512 = scmp.ne.s32.totalorder %s507, %s509
      %p513 = scmp.eq.s32.totalorder %s32, 0
      %p514 = por %p512, %p513
      %p515 = scmp.ne.s32.totalorder %s507, %s509
      %p516 = scmp.eq.s32.totalorder %s37, 1
      %p517 = por %p515, %p516
      %p518 = scmp.ne.s32.totalorder %s509, %s510
      %p519 = scmp.eq.s32.totalorder %s37, 0
      %p520 = por %p518, %p519
      %p521 = scmp.ne.s32.totalorder %s509, %s510
      %p522 = scmp.eq.s32.totalorder %s38, 1
      %p523 = por %p521, %p522
      %p525 = scmp.ne.s32.totalorder %s510, %s524
      %p526 = scmp.eq.s32.totalorder %s38, 0
      %p527 = por %p525, %p526
      %s528 = ssub.s32 %s32, %s39
      %p529 = scmp.eq.s32.totalorder %s528, 0
      %s531 = sadd.s32 %s530, 1
      %s532 = scalar_select %p529, %s530, %s531
      %p535 = pneg %p529
      %p536 = scmp.eq.s32.totalorder %s32, 1
      %p537 = por %p535, %p536
      %p538 = scmp.ne.s32.totalorder %s530, %s533
      %p539 = scmp.eq.s32.totalorder %s32, 0
      %p540 = por %p538, %p539
      %p541 = scmp.ne.s32.totalorder %s530, %s533
      %p542 = scmp.eq.s32.totalorder %s37, 1
      %p543 = por %p541, %p542
      %p544 = scmp.ne.s32.totalorder %s533, %s534
      %p545 = scmp.eq.s32.totalorder %s37, 0
      %p546 = por %p544, %p545
      %p547 = scmp.ne.s32.totalorder %s533, %s534
      %p548 = scmp.eq.s32.totalorder %s38, 1
      %p549 = por %p547, %p548
      %p551 = scmp.ne.s32.totalorder %s534, %s550
      %p552 = scmp.eq.s32.totalorder %s38, 0
      %p553 = por %p551, %p552
      %p554 = scmp.le.s32.totalorder 1, %s32
      %p555 = scmp.lt.s32.totalorder %s32, 3
      %p556 = pnand %p554, %p555
      %p557 = pneg %p556
      // Predicated region
      $region9: #{vgg11_forward.1} parent=5 // pred_check
        _
      $region10: #{vgg11_forward.1} parent=5 // pred_check_branch
        %559 = sbr.rel (%p556) target = $region12
      $region11: #{vgg11_forward.1} parent=5 // pred_region
        %s560 = ssub.s32 %s32, 1
        // Predicated region
        $region13: #{vgg11_forward.1} parent=11 // pred_check
          %p561 = pneg %p79
        $region14: #{vgg11_forward.1} parent=11 // pred_check_branch
          %563 = sbr.rel (%p561) target = $region16
        $region15: #{vgg11_forward.1} parent=11 // pred_region
          _
        $region16: #{vgg11_forward.1} parent=11 // pred_fallthru
          _
        // Predicated region
        $region17: #{vgg11_forward.1} parent=11 // pred_check
          %p564 = pneg %p100
        $region18: #{vgg11_forward.1} parent=11 // pred_check_branch
          %566 = sbr.rel (%p564) target = $region20
        $region19: #{vgg11_forward.1} parent=11 // pred_region
          _
        $region20: #{vgg11_forward.1} parent=11 // pred_fallthru
          _
        // Predicated region
        $region21: #{vgg11_forward.1} parent=11 // pred_check
          %p567 = pneg %p121
        $region22: #{vgg11_forward.1} parent=11 // pred_check_branch
          %569 = sbr.rel (%p567) target = $region24
        $region23: #{vgg11_forward.1} parent=11 // pred_region
          _
        $region24: #{vgg11_forward.1} parent=11 // pred_fallthru
          _
        // Predicated region
        $region25: #{vgg11_forward.1} parent=11 // pred_check
          %p570 = pneg %p142
        $region26: #{vgg11_forward.1} parent=11 // pred_check_branch
          %572 = sbr.rel (%p570) target = $region28
        $region27: #{vgg11_forward.1} parent=11 // pred_region
          _
        $region28: #{vgg11_forward.1} parent=11 // pred_fallthru
          _
        // Predicated region
        $region29: #{vgg11_forward.1} parent=11 // pred_check
          %p573 = pneg %p163
        $region30: #{vgg11_forward.1} parent=11 // pred_check_branch
          %575 = sbr.rel (%p573) target = $region32
        $region31: #{vgg11_forward.1} parent=11 // pred_region
          _
        $region32: #{vgg11_forward.1} parent=11 // pred_fallthru
          _
        // Predicated region
        $region33: #{vgg11_forward.1} parent=11 // pred_check
          %p576 = pneg %p184
        $region34: #{vgg11_forward.1} parent=11 // pred_check_branch
          %578 = sbr.rel (%p576) target = $region36
        $region35: #{vgg11_forward.1} parent=11 // pred_region
          _
        $region36: #{vgg11_forward.1} parent=11 // pred_fallthru
          _
        // Predicated region
        $region37: #{vgg11_forward.1} parent=11 // pred_check
          %p579 = pneg %p205
        $region38: #{vgg11_forward.1} parent=11 // pred_check_branch
          %581 = sbr.rel (%p579) target = $region40
        $region39: #{vgg11_forward.1} parent=11 // pred_region
          _
        $region40: #{vgg11_forward.1} parent=11 // pred_fallthru
          _
        // Predicated region
        $region41: #{vgg11_forward.1} parent=11 // pred_check
          %p582 = pneg %p226
        $region42: #{vgg11_forward.1} parent=11 // pred_check_branch
          %584 = sbr.rel (%p582) target = $region44
        $region43: #{vgg11_forward.1} parent=11 // pred_region
          _
        $region44: #{vgg11_forward.1} parent=11 // pred_fallthru
          _
        // Predicated region
        $region45: #{vgg11_forward.1} parent=11 // pred_check
          %p585 = pneg %p247
        $region46: #{vgg11_forward.1} parent=11 // pred_check_branch
          %587 = sbr.rel (%p585) target = $region48
        $region47: #{vgg11_forward.1} parent=11 // pred_region
          _
        $region48: #{vgg11_forward.1} parent=11 // pred_fallthru
          _
        // Predicated region
        $region49: #{vgg11_forward.1} parent=11 // pred_check
          %p588 = pneg %p268
        $region50: #{vgg11_forward.1} parent=11 // pred_check_branch
          %590 = sbr.rel (%p588) target = $region52
        $region51: #{vgg11_forward.1} parent=11 // pred_region
          _
        $region52: #{vgg11_forward.1} parent=11 // pred_fallthru
          _
        // Predicated region
        $region53: #{vgg11_forward.1} parent=11 // pred_check
          %p591 = pneg %p289
        $region54: #{vgg11_forward.1} parent=11 // pred_check_branch
          %593 = sbr.rel (%p591) target = $region56
        $region55: #{vgg11_forward.1} parent=11 // pred_region
          _
        $region56: #{vgg11_forward.1} parent=11 // pred_fallthru
          _
        // Predicated region
        $region57: #{vgg11_forward.1} parent=11 // pred_check
          %p594 = pneg %p310
        $region58: #{vgg11_forward.1} parent=11 // pred_check_branch
          %596 = sbr.rel (%p594) target = $region60
        $region59: #{vgg11_forward.1} parent=11 // pred_region
          _
        $region60: #{vgg11_forward.1} parent=11 // pred_fallthru
          _
        // Predicated region
        $region61: #{vgg11_forward.1} parent=11 // pred_check
          %p597 = pneg %p331
        $region62: #{vgg11_forward.1} parent=11 // pred_check_branch
          %599 = sbr.rel (%p597) target = $region64
        $region63: #{vgg11_forward.1} parent=11 // pred_region
          _
        $region64: #{vgg11_forward.1} parent=11 // pred_fallthru
          _
        // Predicated region
        $region65: #{vgg11_forward.1} parent=11 // pred_check
          %p600 = pneg %p352
        $region66: #{vgg11_forward.1} parent=11 // pred_check_branch
          %602 = sbr.rel (%p600) target = $region68
        $region67: #{vgg11_forward.1} parent=11 // pred_region
          _
        $region68: #{vgg11_forward.1} parent=11 // pred_fallthru
          _
        // Predicated region
        $region69: #{vgg11_forward.1} parent=11 // pred_check
          %p603 = pneg %p373
        $region70: #{vgg11_forward.1} parent=11 // pred_check_branch
          %605 = sbr.rel (%p603) target = $region72
        $region71: #{vgg11_forward.1} parent=11 // pred_region
          _
        $region72: #{vgg11_forward.1} parent=11 // pred_fallthru
          _
        // Predicated region
        $region73: #{vgg11_forward.1} parent=11 // pred_check
          %p606 = pneg %p394
        $region74: #{vgg11_forward.1} parent=11 // pred_check_branch
          %608 = sbr.rel (%p606) target = $region76
        $region75: #{vgg11_forward.1} parent=11 // pred_region
          _
        $region76: #{vgg11_forward.1} parent=11 // pred_fallthru
          _
        // Predicated region
        $region77: #{vgg11_forward.1} parent=11 // pred_check
          %p609 = pneg %p415
        $region78: #{vgg11_forward.1} parent=11 // pred_check_branch
          %611 = sbr.rel (%p609) target = $region80
        $region79: #{vgg11_forward.1} parent=11 // pred_region
          _
        $region80: #{vgg11_forward.1} parent=11 // pred_fallthru
          _
        // Predicated region
        $region81: #{vgg11_forward.1} parent=11 // pred_check
          %p612 = pneg %p436
        $region82: #{vgg11_forward.1} parent=11 // pred_check_branch
          %614 = sbr.rel (%p612) target = $region84
        $region83: #{vgg11_forward.1} parent=11 // pred_region
          _
        $region84: #{vgg11_forward.1} parent=11 // pred_fallthru
          _
        // Predicated region
        $region85: #{vgg11_forward.1} parent=11 // pred_check
          %p615 = pneg %p457
        $region86: #{vgg11_forward.1} parent=11 // pred_check_branch
          %617 = sbr.rel (%p615) target = $region88
        $region87: #{vgg11_forward.1} parent=11 // pred_region
          _
        $region88: #{vgg11_forward.1} parent=11 // pred_fallthru
          _
        // Predicated region
        $region89: #{vgg11_forward.1} parent=11 // pred_check
          %p618 = pneg %p478
        $region90: #{vgg11_forward.1} parent=11 // pred_check_branch
          %620 = sbr.rel (%p618) target = $region92
        $region91: #{vgg11_forward.1} parent=11 // pred_region
          _
        $region92: #{vgg11_forward.1} parent=11 // pred_fallthru
          _
        // Predicated region
        $region93: #{vgg11_forward.1} parent=11 // pred_check
          %p621 = pneg %p499
        $region94: #{vgg11_forward.1} parent=11 // pred_check_branch
          %623 = sbr.rel (%p621) target = $region96
        $region95: #{vgg11_forward.1} parent=11 // pred_region
          _
        $region96: #{vgg11_forward.1} parent=11 // pred_fallthru
          _
        // Predicated region
        $region97: #{vgg11_forward.1} parent=11 // pred_check
          %p624 = pneg %p520
        $region98: #{vgg11_forward.1} parent=11 // pred_check_branch
          %626 = sbr.rel (%p624) target = $region100
        $region99: #{vgg11_forward.1} parent=11 // pred_region
          _
        $region100: #{vgg11_forward.1} parent=11 // pred_fallthru
          _
      $region12: #{vgg11_forward.1} parent=5 // pred_fallthru
        _
      %p627 = scmp.lt.s32.totalorder %s32, 2
      // Predicated region
      $region101: #{vgg11_forward.1} parent=5 // pred_check
        %p628 = pneg %p627
      $region102: #{vgg11_forward.1} parent=5 // pred_check_branch
        %630 = sbr.rel (%p628) target = $region104
      $region103: #{vgg11_forward.1} parent=5 // pred_region
        // Predicated region
        $region105: #{vgg11_forward.1} parent=103 // pred_check
          %p631 = pneg %p52
        $region106: #{vgg11_forward.1} parent=103 // pred_check_branch
          %633 = sbr.rel (%p631) target = $region108
        $region107: #{vgg11_forward.1} parent=103 // pred_region
          %p634 = scmp.lt.s32.totalorder %s32, 1
          %s635 = scalar_select %p634, %s32, 1
          %s636 = scalar_lea.vmem %s0, %s635
        $region108: #{vgg11_forward.1} parent=103 // pred_fallthru
          _
      $region104: #{vgg11_forward.1} parent=5 // pred_fallthru
        _
      %p637 = scmp.le.s32.totalorder 1, %s32
      %p638 = scmp.lt.s32.totalorder %s32, 3
      %p639 = pnand %p637, %p638
      %p640 = pneg %p639
      // Predicated region
      $region109: #{vgg11_forward.1} parent=5 // pred_check
        _
      $region110: #{vgg11_forward.1} parent=5 // pred_check_branch
        %642 = sbr.rel (%p639) target = $region112
      $region111: #{vgg11_forward.1} parent=5 // pred_region
        %s643 = ssub.s32 %s32, 1
        %p644 = scmp.lt.s32.totalorder %s37, 1
        %s645 = scalar_select %p644, %s37, 1
        %s646 = scalar_lea.vmem %s0, %s645
        %p647 = pneg %p58
        %p648 = pneg %p55
        %p649 = pneg %p79
        %p650 = pneg %p76
        %p651 = pneg %p100
        %p652 = pneg %p97
        %p653 = pneg %p121
        %p654 = pneg %p118
        %p655 = pneg %p142
        %p656 = pneg %p139
        %p657 = pneg %p163
        %p658 = pneg %p160
        %p659 = pneg %p184
        %p660 = pneg %p181
        %p661 = pneg %p205
        %p662 = pneg %p202
        %p663 = pneg %p226
        %p664 = pneg %p223
        %p665 = pneg %p247
        %p666 = pneg %p244
        %p667 = pneg %p268
        %p668 = pneg %p265
        %p669 = pneg %p289
        %p670 = pneg %p286
        %p671 = pneg %p310
        %p672 = pneg %p307
        %p673 = pneg %p331
        %p674 = pneg %p328
        %p675 = pneg %p352
        %p676 = pneg %p349
        %p677 = pneg %p373
        %p678 = pneg %p370
        %p679 = pneg %p394
        %p680 = pneg %p391
        %p681 = pneg %p415
        %p682 = pneg %p412
        %p683 = pneg %p436
        %p684 = pneg %p433
        %p685 = pneg %p457
        %p686 = pneg %p454
        %p687 = pneg %p478
        %p688 = pneg %p475
        %p689 = pneg %p499
        %p690 = pneg %p496
        %p691 = pneg %p520
        %p692 = pneg %p517
        %p693 = pneg %p546
        %p694 = pneg %p543
        %s695 = sand.u32 %s533, 1
        %s696 = scalar_lea.sflag [#allocation3], %s695
        %s697 = sand.u32 %s533, 1
        %s698 = scalar_lea.vmem [#allocation2], %s697
        %p699 = scmp.lt.s32.totalorder %s37, 1
        %s700 = scalar_select %p699, %s37, 1
        %s701 = scalar_lea.vmem %s0, %s700
        %v702 = vld [vmem:[%s701] sm:$0x1]
        %v704 = vperm.slane %v702, 0
        %705 = vrot.lane.b32.xlu0 %v704, 1
        %v706 = vpop.permute.xlu0 %705
        %vm708 = vcmask 7168
        %709 = vrot.lane.b32.xlu0 %v704, 127
        %v710 = vpop.permute.xlu0 %709
        %v712 = vld [vmem:[%s1] sm:$0xf]
        %714 = vset.pattern.permute.xlu0 0
        %715 = vperm.xlu0 %714, %v712
        %v716 = vpop.permute.xlu0 %715
        %v718 = vperm.slane %v706, 0
        %v719 = vmul.f32 %v716, %v718
        %720 = vset.pattern.permute.xlu0 1
        %721 = vperm.xlu0 %720, %v712
        %v722 = vpop.permute.xlu0 %721
        %v725 = vmul.f32 %v722, %v704
        %v726 = vadd.f32 %v719, %v725
        %727 = vset.pattern.permute.xlu0 2
        %728 = vperm.xlu0 %727, %v712
        %v729 = vpop.permute.xlu0 %728
        %v731 = vperm.slane %v710, 0
        %v732 = vmul.f32 %v729, %v731
        %v733 = vadd.f32 %v726, %v732
        %v734 = vld [vmem:[%s2] sm:$0xf]
        %736 = vset.pattern.permute.xlu0 0
        %737 = vperm.xlu0 %736, %v734
        %v738 = vpop.permute.xlu0 %737
        %v740 = vadd.f32 %v733, %v738
        %v741 = vlaneseq
        %v742 = vshrl.u32 %v741, 7
        %v743 = vadd.s32 %v742, 8
        %v744 = vadd.s32 %v742, 16
        %v745 = vadd.s32 %v742, 24
        %v746 = vadd.s32 %v742, 32
        %v747 = vadd.s32 %v742, 40
        %v748 = vadd.s32 %v742, 48
        %v749 = vadd.s32 %v742, 56
        %v750 = vadd.s32 %v742, 64
        %v751 = vadd.s32 %v742, 72
        %v752 = vadd.s32 %v742, 80
        %v753 = vadd.s32 %v742, 88
        %v754 = vadd.s32 %v742, 96
        %v755 = vadd.s32 %v742, 104
        %v756 = vadd.s32 %v742, 112
        %v757 = vadd.s32 %v742, 120
        %v758 = vlaneseq
        %v759 = vand.u32 %v758, 127
        %v760 = vmul.u32 %v759, 2
        %vm761 = vcmp.eq.s32.totalorder %v742, %v760
        %vm762 = vcmp.eq.s32.totalorder %v743, %v760
        %vm763 = vcmp.eq.s32.totalorder %v744, %v760
        %vm764 = vcmp.eq.s32.totalorder %v745, %v760
        %vm765 = vcmp.eq.s32.totalorder %v746, %v760
        %vm766 = vcmp.eq.s32.totalorder %v747, %v760
        %vm767 = vcmp.eq.s32.totalorder %v748, %v760
        %vm768 = vcmp.eq.s32.totalorder %v749, %v760
        %vm769 = vcmp.eq.s32.totalorder %v750, %v760
        %vm770 = vcmp.eq.s32.totalorder %v751, %v760
        %vm771 = vcmp.eq.s32.totalorder %v752, %v760
        %vm772 = vcmp.eq.s32.totalorder %v753, %v760
        %vm773 = vcmp.eq.s32.totalorder %v754, %v760
        %vm774 = vcmp.eq.s32.totalorder %v755, %v760
        %vm775 = vcmp.eq.s32.totalorder %v756, %v760
        %vm776 = vcmp.eq.s32.totalorder %v757, %v760
        %v777 = vsel %vm761, 1, 0
        %v778 = vsel %vm762, 1, 0
        %v779 = vsel %vm763, 1, 0
        %v780 = vsel %vm764, 1, 0
        %v781 = vsel %vm765, 1, 0
        %v782 = vsel %vm766, 1, 0
        %v783 = vsel %vm767, 1, 0
        %v784 = vsel %vm768, 1, 0
        %v785 = vsel %vm769, 1, 0
        %v786 = vsel %vm770, 1, 0
        %v787 = vsel %vm771, 1, 0
        %v788 = vsel %vm772, 1, 0
        %v789 = vsel %vm773, 1, 0
        %v790 = vsel %vm774, 1, 0
        %v791 = vsel %vm775, 1, 0
        %v792 = vsel %vm776, 1, 0
        %v793 = vcvt.s32.f32 %v777
        %v794 = vcvt.s32.f32 %v778
        %v795 = vcvt.s32.f32 %v779
        %v796 = vcvt.s32.f32 %v780
        %v797 = vcvt.s32.f32 %v781
        %v798 = vcvt.s32.f32 %v782
        %v799 = vcvt.s32.f32 %v783
        %v800 = vcvt.s32.f32 %v784
        %v801 = vcvt.s32.f32 %v785
        %v802 = vcvt.s32.f32 %v786
        %v803 = vcvt.s32.f32 %v787
        %v804 = vcvt.s32.f32 %v788
        %v805 = vcvt.s32.f32 %v789
        %v806 = vcvt.s32.f32 %v790
        %v807 = vcvt.s32.f32 %v791
        %v808 = vcvt.s32.f32 %v792
        %v809 = vadd.s32 %v760, 1
        %vm810 = vcmp.eq.s32.totalorder %v742, %v809
        %vm811 = vcmp.eq.s32.totalorder %v743, %v809
        %vm812 = vcmp.eq.s32.totalorder %v744, %v809
        %vm813 = vcmp.eq.s32.totalorder %v745, %v809
        %vm814 = vcmp.eq.s32.totalorder %v746, %v809
        %vm815 = vcmp.eq.s32.totalorder %v747, %v809
        %vm816 = vcmp.eq.s32.totalorder %v748, %v809
        %vm817 = vcmp.eq.s32.totalorder %v749, %v809
        %vm818 = vcmp.eq.s32.totalorder %v750, %v809
        %vm819 = vcmp.eq.s32.totalorder %v751, %v809
        %vm820 = vcmp.eq.s32.totalorder %v752, %v809
        %vm821 = vcmp.eq.s32.totalorder %v753, %v809
        %vm822 = vcmp.eq.s32.totalorder %v754, %v809
        %vm823 = vcmp.eq.s32.totalorder %v755, %v809
        %vm824 = vcmp.eq.s32.totalorder %v756, %v809
        %vm825 = vcmp.eq.s32.totalorder %v757, %v809
        %v826 = vsel %vm810, 1, 0
        %v827 = vsel %vm811, 1, 0
        %v828 = vsel %vm812, 1, 0
        %v829 = vsel %vm813, 1, 0
        %v830 = vsel %vm814, 1, 0
        %v831 = vsel %vm815, 1, 0
        %v832 = vsel %vm816, 1, 0
        %v833 = vsel %vm817, 1, 0
        %v834 = vsel %vm818, 1, 0
        %v835 = vsel %vm819, 1, 0
        %v836 = vsel %vm820, 1, 0
        %v837 = vsel %vm821, 1, 0
        %v838 = vsel %vm822, 1, 0
        %v839 = vsel %vm823, 1, 0
        %v840 = vsel %vm824, 1, 0
        %v841 = vsel %vm825, 1, 0
        %v842 = vcvt.s32.f32 %v826
        %v843 = vcvt.s32.f32 %v827
        %v844 = vcvt.s32.f32 %v828
        %v845 = vcvt.s32.f32 %v829
        %v846 = vcvt.s32.f32 %v830
        %v847 = vcvt.s32.f32 %v831
        %v848 = vcvt.s32.f32 %v832
        %v849 = vcvt.s32.f32 %v833
        %v850 = vcvt.s32.f32 %v834
        %v851 = vcvt.s32.f32 %v835
        %v852 = vcvt.s32.f32 %v836
        %v853 = vcvt.s32.f32 %v837
        %v854 = vcvt.s32.f32 %v838
        %v855 = vcvt.s32.f32 %v839
        %v856 = vcvt.s32.f32 %v840
        %v857 = vcvt.s32.f32 %v841
        %858 = vmatpush.msra.mxu0 %v808
        %859 = vmatpush.msra.mxu0 %v807
        %860 = vmatpush.msra.mxu0 %v806
        %861 = vmatpush.msra.mxu0 %v805
        %862 = vmatpush.msra.mxu0 %v804
        %863 = vmatpush.msra.mxu0 %v803
        %864 = vmatpush.msra.mxu0 %v802
        %865 = vmatpush.msra.mxu0 %v801
        %866 = vmatpush.msra.mxu0 %v800
        %867 = vmatpush.msra.mxu0 %v799
        %868 = vmatpush.msra.mxu0 %v798
        %869 = vmatpush.msra.mxu0 %v797
        %870 = vmatpush.msra.mxu0 %v796
        %871 = vmatpush.msra.mxu0 %v795
        %872 = vmatpush.msra.mxu0 %v794
        %873 = vmatpush.msra.mxu0 %v793
        %874 = vmatmul.f32.gmra.mxu0 %v740
        %v875 = vpop.f32.mrf.mxu0
        %v876 = vadd.f32 0.0, %v875
        %877 = vdwg.mxu0
        %878 = vmatpush.msra.mxu0 %v857
        %879 = vmatpush.msra.mxu0 %v856
        %880 = vmatpush.msra.mxu0 %v855
        %881 = vmatpush.msra.mxu0 %v854
        %882 = vmatpush.msra.mxu0 %v853
        %883 = vmatpush.msra.mxu0 %v852
        %884 = vmatpush.msra.mxu0 %v851
        %885 = vmatpush.msra.mxu0 %v850
        %886 = vmatpush.msra.mxu0 %v849
        %887 = vmatpush.msra.mxu0 %v848
        %888 = vmatpush.msra.mxu0 %v847
        %889 = vmatpush.msra.mxu0 %v846
        %890 = vmatpush.msra.mxu0 %v845
        %891 = vmatpush.msra.mxu0 %v844
        %892 = vmatpush.msra.mxu0 %v843
        %893 = vmatpush.msra.mxu0 %v842
        %894 = vmatmul.f32.gmra.mxu0 %v740
        %v895 = vpop.f32.mrf.mxu0
        %v896 = vadd.f32 0.0, %v895
        %897 = vdwg.mxu0
        %v898 = vmax.f32 %v876, %v896
        %v899 = vtanh.pop %v898
        %901 = vrot.lane.b32.xlu0 %v899, 65
        %v902 = vpop.permute.xlu0 %901
        %904 = vrot.lane.b32.xlu0 %v899, 1
        %v905 = vpop.permute.xlu0 %904
        %v907 = vsel %vm708, %v902, %v905
        %908 = vrot.lane.b32.xlu0 %v899, 127
        %v909 = vpop.permute.xlu0 %908
        %911 = vrot.lane.b32.xlu0 %v899, 63
        %v912 = vpop.permute.xlu0 %911
        %vm914 = vcmask 515072
        %v915 = vsel %vm914, %v909, %v912
        %v916 = vld [vmem:[%s3] sm:$0xff]
        %v917 = vrot.slane %v899, 4
        %vm919 = vcmask 1043456
        %v920 = vsel %vm919, %v907, %v917
        %v921 = vld [vmem:[%s4] sm:$0xff]
        %923 = vset.pattern.permute.xlu0 0
        %924 = vperm.xlu0 %923, %v921
        %v925 = vpop.permute.xlu0 %924
        %vm927 = vcmask 97280
        %v929 = vsel %vm927, %v916, 0
        %v932 = vsel %vm919, %v915, 0
        %934 = vmatpush.msra.mxu0 0.0
        %935 = vmatpush.msra.mxu0 0.0
        %936 = vmatpush.msra.mxu0 0.0
        %937 = vmatpush.msra.mxu0 0.0
        %938 = vmatpush.msra.mxu0 0.0
        %939 = vmatpush.msra.mxu0 0.0
        %940 = vmatpush.msra.mxu0 0.0
        %941 = vmatpush.msra.mxu0 0.0
        %942 = vmatpush.msra.mxu0 0.0
        %943 = vmatpush.msra.mxu0 0.0
        %944 = vmatpush.msra.mxu0 0.0
        %945 = vmatpush.msra.mxu0 0.0
        %946 = vmatpush.msra.mxu0 0.0
        %947 = vmatpush.msra.mxu0 0.0
        %948 = vmatpush.msra.mxu0 %v932
        %949 = vmatpush.msra.mxu0 %v920
        %950 = vmatmul.f32.gmra.mxu0 %v929
        %v951 = vpop.f32.mrf.mxu0
        %v952 = vadd.f32 %v925, %v951
        %953 = vdwg.mxu0
        %vm954 = vcmask 523264
        %v956 = vsel %vm954, %v952, 0
        %958 = vmatpush.msra.mxu0 0.0
        %959 = vmatpush.msra.mxu0 0.0
        %960 = vmatpush.msra.mxu0 0.0
        %961 = vmatpush.msra.mxu0 0.0
        %962 = vmatpush.msra.mxu0 0.0
        %963 = vmatpush.msra.mxu0 0.0
        %964 = vmatpush.msra.mxu0 0.0
        %965 = vmatpush.msra.mxu0 0.0
        %966 = vmatpush.msra.mxu0 %v800
        %967 = vmatpush.msra.mxu0 %v799
        %968 = vmatpush.msra.mxu0 %v798
        %969 = vmatpush.msra.mxu0 %v797
        %970 = vmatpush.msra.mxu0 %v796
        %971 = vmatpush.msra.mxu0 %v795
        %972 = vmatpush.msra.mxu0 %v794
        %973 = vmatpush.msra.mxu0 %v793
        %974 = vmatmul.f32.gmra.mxu0 %v956
        %v975 = vpop.f32.mrf.mxu0
        %v976 = vadd.f32 0.0, %v975
        %977 = vdwg.mxu0
        %978 = vmatpush.msra.mxu0 0.0
        %979 = vmatpush.msra.mxu0 0.0
        %980 = vmatpush.msra.mxu0 0.0
        %981 = vmatpush.msra.mxu0 0.0
        %982 = vmatpush.msra.mxu0 0.0
        %983 = vmatpush.msra.mxu0 0.0
        %984 = vmatpush.msra.mxu0 0.0
        %985 = vmatpush.msra.mxu0 0.0
        %986 = vmatpush.msra.mxu0 %v849
        %987 = vmatpush.msra.mxu0 %v848
        %988 = vmatpush.msra.mxu0 %v847
        %989 = vmatpush.msra.mxu0 %v846
        %990 = vmatpush.msra.mxu0 %v845
        %991 = vmatpush.msra.mxu0 %v844
        %992 = vmatpush.msra.mxu0 %v843
        %993 = vmatpush.msra.mxu0 %v842
        %994 = vmatmul.f32.gmra.mxu0 %v956
        %v995 = vpop.f32.mrf.mxu0
        %v996 = vadd.f32 0.0, %v995
        %997 = vdwg.mxu0
        %v998 = vmax.f32 %v976, %v996
        %v999 = vtanh.pop %v998
        %1001 = vrot.lane.b32.xlu0 %v999, 97
        %v1002 = vpop.permute.xlu0 %1001
        %1004 = vrot.lane.b32.xlu0 %v999, 1
        %v1005 = vpop.permute.xlu0 %1004
        %v1007 = vsel %vm708, %v1002, %v1005
        %1008 = vrot.lane.b32.xlu0 %v999, 127
        %v1009 = vpop.permute.xlu0 %1008
        %1011 = vrot.lane.b32.xlu0 %v999, 31
        %v1012 = vpop.permute.xlu0 %1011
        %vm1014 = vcmask 252928
        %v1015 = vsel %vm1014, %v1009, %v1012
        %v1016 = vld [vmem:[%s5] sm:$0xff]
        %v1017 = vld [vmem:[%s5 + $0x8] sm:$0xff]
        %v1018 = vld [vmem:[%s6] sm:$0xff]
        %v1019 = vld [vmem:[%s6 + $0x8] sm:$0xff]
        %1021 = vset.pattern.permute.xlu0 0
        %1022 = vperm.xlu0 %1021, %v1018
        %v1023 = vpop.permute.xlu0 %1022
        %1026 = vset.pattern.permute.xlu0 0
        %1027 = vperm.xlu0 %1026, %v1019
        %v1028 = vpop.permute.xlu0 %1027
        %vm1030 = vcmask 195584
        %v1032 = vsel %vm1030, %v1016, 0
        %v1035 = vsel %vm1030, %v1017, 0
        %1037 = vmatpush.msra.mxu0 0.0
        %1038 = vmatpush.msra.mxu0 0.0
        %1039 = vmatpush.msra.mxu0 0.0
        %1040 = vmatpush.msra.mxu0 0.0
        %1041 = vmatpush.msra.mxu0 0.0
        %1042 = vmatpush.msra.mxu0 0.0
        %1043 = vmatpush.msra.mxu0 0.0
        %1044 = vmatpush.msra.mxu0 0.0
        %1045 = vmatpush.msra.mxu0 0.0
        %1046 = vmatpush.msra.mxu0 0.0
        %1047 = vmatpush.msra.mxu0 0.0
        %1048 = vmatpush.msra.mxu0 0.0
        %1049 = vmatpush.msra.mxu0 0.0
        %1050 = vmatpush.msra.mxu0 %v1015
        %1051 = vmatpush.msra.mxu0 %v999
        %1052 = vmatpush.msra.mxu0 %v1007
        %1053 = vmatmul.f32.gmra.mxu0 %v1032
        %v1054 = vpop.f32.mrf.mxu0
        %v1055 = vadd.f32 %v1023, %v1054
        %1056 = vmatmul.f32.gmra.mxu0 %v1035
        %v1057 = vpop.f32.mrf.mxu0
        %v1058 = vadd.f32 %v1028, %v1057
        %1059 = vdwg.mxu0
        %v1060 = vtanh.pop %v1055
        %v1061 = vtanh.pop %v1058
        %1064 = vrot.lane.b32.xlu0 %v1060, 97
        %v1065 = vpop.permute.xlu0 %1064
        %1066 = vrot.lane.b32.xlu0 %v1061, 97
        %v1067 = vpop.permute.xlu0 %1066
        %1070 = vrot.lane.b32.xlu0 %v1060, 1
        %v1071 = vpop.permute.xlu0 %1070
        %1072 = vrot.lane.b32.xlu0 %v1061, 1
        %v1073 = vpop.permute.xlu0 %1072
        %v1076 = vsel %vm708, %v1065, %v1071
        %v1077 = vsel %vm708, %v1067, %v1073
        %1078 = vrot.lane.b32.xlu0 %v1060, 127
        %v1079 = vpop.permute.xlu0 %1078
        %1080 = vrot.lane.b32.xlu0 %v1061, 127
        %v1081 = vpop.permute.xlu0 %1080
        %1084 = vrot.lane.b32.xlu0 %v1060, 31
        %v1085 = vpop.permute.xlu0 %1084
        %1086 = vrot.lane.b32.xlu0 %v1061, 31
        %v1087 = vpop.permute.xlu0 %1086
        %v1090 = vsel %vm1014, %v1079, %v1085
        %v1091 = vsel %vm1014, %v1081, %v1087
        %v1092 = vld [vmem:[%s7] sm:$0xff]
        %v1093 = vld [vmem:[%s7 + $0x8] sm:$0xff]
        %v1094 = vld [vmem:[%s8] sm:$0xff]
        %v1095 = vld [vmem:[%s8 + $0x8] sm:$0xff]
        %1097 = vset.pattern.permute.xlu0 0
        %1098 = vperm.xlu0 %1097, %v1094
        %v1099 = vpop.permute.xlu0 %1098
        %1102 = vset.pattern.permute.xlu0 0
        %1103 = vperm.xlu0 %1102, %v1095
        %v1104 = vpop.permute.xlu0 %1103
        %vm1106 = vcmask 392192
        %v1108 = vsel %vm1106, %v1092, 0
        %v1111 = vsel %vm1106, %v1093, 0
        %1113 = vmatpush.msra.mxu0 0.0
        %1114 = vmatpush.msra.mxu0 0.0
        %1115 = vmatpush.msra.mxu0 0.0
        %1116 = vmatpush.msra.mxu0 0.0
        %1117 = vmatpush.msra.mxu0 0.0
        %1118 = vmatpush.msra.mxu0 0.0
        %1119 = vmatpush.msra.mxu0 0.0
        %1120 = vmatpush.msra.mxu0 0.0
        %1121 = vmatpush.msra.mxu0 0.0
        %1122 = vmatpush.msra.mxu0 0.0
        %1123 = vmatpush.msra.mxu0 %v1091
        %1124 = vmatpush.msra.mxu0 %v1090
        %1125 = vmatpush.msra.mxu0 %v1061
        %1126 = vmatpush.msra.mxu0 %v1060
        %1127 = vmatpush.msra.mxu0 %v1077
        %1128 = vmatpush.msra.mxu0 %v1076
        %1129 = vmatmul.f32.gmra.mxu0 %v1108
        %v1130 = vpop.f32.mrf.mxu0
        %v1131 = vadd.f32 %v1099, %v1130
        %1132 = vmatmul.f32.gmra.mxu0 %v1111
        %v1133 = vpop.f32.mrf.mxu0
        %v1134 = vadd.f32 %v1104, %v1133
        %1135 = vdwg.mxu0
        %vm1136 = vcmask 261120
        %v1138 = vsel %vm1136, %v1131, 0
        %v1141 = vsel %vm1136, %v1134, 0
        %1143 = vmatpush.msra.mxu0 0.0
        %1144 = vmatpush.msra.mxu0 0.0
        %1145 = vmatpush.msra.mxu0 0.0
        %1146 = vmatpush.msra.mxu0 0.0
        %1147 = vmatpush.msra.mxu0 0.0
        %1148 = vmatpush.msra.mxu0 0.0
        %1149 = vmatpush.msra.mxu0 0.0
        %1150 = vmatpush.msra.mxu0 0.0
        %1151 = vmatpush.msra.mxu0 0.0
        %1152 = vmatpush.msra.mxu0 0.0
        %1153 = vmatpush.msra.mxu0 0.0
        %1154 = vmatpush.msra.mxu0 0.0
        %1155 = vmatpush.msra.mxu0 %v796
        %1156 = vmatpush.msra.mxu0 %v795
        %1157 = vmatpush.msra.mxu0 %v794
        %1158 = vmatpush.msra.mxu0 %v793
        %1159 = vmatmul.f32.gmra.mxu0 %v1138
        %v1160 = vpop.f32.mrf.mxu0
        %v1161 = vadd.f32 0.0, %v1160
        %1162 = vmatmul.f32.gmra.mxu0 %v1141
        %v1163 = vpop.f32.mrf.mxu0
        %v1164 = vadd.f32 0.0, %v1163
        %1165 = vdwg.mxu0
        %1166 = vmatpush.msra.mxu0 0.0
        %1167 = vmatpush.msra.mxu0 0.0
        %1168 = vmatpush.msra.mxu0 0.0
        %1169 = vmatpush.msra.mxu0 0.0
        %1170 = vmatpush.msra.mxu0 0.0
        %1171 = vmatpush.msra.mxu0 0.0
        %1172 = vmatpush.msra.mxu0 0.0
        %1173 = vmatpush.msra.mxu0 0.0
        %1174 = vmatpush.msra.mxu0 0.0
        %1175 = vmatpush.msra.mxu0 0.0
        %1176 = vmatpush.msra.mxu0 0.0
        %1177 = vmatpush.msra.mxu0 0.0
        %1178 = vmatpush.msra.mxu0 %v845
        %1179 = vmatpush.msra.mxu0 %v844
        %1180 = vmatpush.msra.mxu0 %v843
        %1181 = vmatpush.msra.mxu0 %v842
        %1182 = vmatmul.f32.gmra.mxu0 %v1138
        %v1183 = vpop.f32.mrf.mxu0
        %v1184 = vadd.f32 0.0, %v1183
        %1185 = vmatmul.f32.gmra.mxu0 %v1141
        %v1186 = vpop.f32.mrf.mxu0
        %v1187 = vadd.f32 0.0, %v1186
        %1188 = vdwg.mxu0
        %v1189 = vmax.f32 %v1161, %v1184
        %v1190 = vmax.f32 %v1164, %v1187
        %v1191 = vtanh.pop %v1189
        %v1192 = vtanh.pop %v1190
        %1195 = vrot.lane.b32.xlu0 %v1191, 113
        %v1196 = vpop.permute.xlu0 %1195
        %1197 = vrot.lane.b32.xlu0 %v1192, 113
        %v1198 = vpop.permute.xlu0 %1197
        %1201 = vrot.lane.b32.xlu0 %v1191, 1
        %v1202 = vpop.permute.xlu0 %1201
        %1203 = vrot.lane.b32.xlu0 %v1192, 1
        %v1204 = vpop.permute.xlu0 %1203
        %v1207 = vsel %vm708, %v1196, %v1202
        %v1208 = vsel %vm708, %v1198, %v1204
        %1209 = vrot.lane.b32.xlu0 %v1191, 127
        %v1210 = vpop.permute.xlu0 %1209
        %1211 = vrot.lane.b32.xlu0 %v1192, 127
        %v1212 = vpop.permute.xlu0 %1211
        %1215 = vrot.lane.b32.xlu0 %v1191, 15
        %v1216 = vpop.permute.xlu0 %1215
        %1217 = vrot.lane.b32.xlu0 %v1192, 15
        %v1218 = vpop.permute.xlu0 %1217
        %vm1221 = vcmask 121856
        %v1222 = vsel %vm1221, %v1210, %v1216
        %v1223 = vsel %vm1221, %v1212, %v1218
        %v1224 = vld [vmem:[%s9] sm:$0xff]
        %v1225 = vld [vmem:[%s9 + $0x8] sm:$0xff]
        %v1226 = vld [vmem:[%s10] sm:$0xff]
        %v1227 = vld [vmem:[%s10 + $0x8] sm:$0xff]
        %1229 = vset.pattern.permute.xlu0 0
        %1230 = vperm.xlu0 %1229, %v1226
        %v1231 = vpop.permute.xlu0 %1230
        %1234 = vset.pattern.permute.xlu0 0
        %1235 = vperm.xlu0 %1234, %v1227
        %v1236 = vpop.permute.xlu0 %1235
        %v1239 = vsel %vm1106, %v1224, 0
        %v1242 = vsel %vm1106, %v1225, 0
        %1244 = vmatpush.msra.mxu0 0.0
        %1245 = vmatpush.msra.mxu0 0.0
        %1246 = vmatpush.msra.mxu0 0.0
        %1247 = vmatpush.msra.mxu0 0.0
        %1248 = vmatpush.msra.mxu0 0.0
        %1249 = vmatpush.msra.mxu0 0.0
        %1250 = vmatpush.msra.mxu0 0.0
        %1251 = vmatpush.msra.mxu0 0.0
        %1252 = vmatpush.msra.mxu0 0.0
        %1253 = vmatpush.msra.mxu0 0.0
        %1254 = vmatpush.msra.mxu0 %v1223
        %1255 = vmatpush.msra.mxu0 %v1222
        %1256 = vmatpush.msra.mxu0 %v1192
        %1257 = vmatpush.msra.mxu0 %v1191
        %1258 = vmatpush.msra.mxu0 %v1208
        %1259 = vmatpush.msra.mxu0 %v1207
        %1260 = vmatmul.f32.gmra.mxu0 %v1239
        %v1261 = vpop.f32.mrf.mxu0
        %v1262 = vadd.f32 %v1231, %v1261
        %1263 = vmatmul.f32.gmra.mxu0 %v1242
        %v1264 = vpop.f32.mrf.mxu0
        %v1265 = vadd.f32 %v1236, %v1264
        %1266 = vdwg.mxu0
        %v1267 = vtanh.pop %v1262
        %v1268 = vtanh.pop %v1265
        %1271 = vrot.lane.b32.xlu0 %v1267, 113
        %v1272 = vpop.permute.xlu0 %1271
        %1273 = vrot.lane.b32.xlu0 %v1268, 113
        %v1274 = vpop.permute.xlu0 %1273
        %1277 = vrot.lane.b32.xlu0 %v1267, 1
        %v1278 = vpop.permute.xlu0 %1277
        %1279 = vrot.lane.b32.xlu0 %v1268, 1
        %v1280 = vpop.permute.xlu0 %1279
        %v1283 = vsel %vm708, %v1272, %v1278
        %v1284 = vsel %vm708, %v1274, %v1280
        %1285 = vrot.lane.b32.xlu0 %v1267, 127
        %v1286 = vpop.permute.xlu0 %1285
        %1287 = vrot.lane.b32.xlu0 %v1268, 127
        %v1288 = vpop.permute.xlu0 %1287
        %1291 = vrot.lane.b32.xlu0 %v1267, 15
        %v1292 = vpop.permute.xlu0 %1291
        %1293 = vrot.lane.b32.xlu0 %v1268, 15
        %v1294 = vpop.permute.xlu0 %1293
        %v1297 = vsel %vm1221, %v1286, %v1292
        %v1298 = vsel %vm1221, %v1288, %v1294
        %v1299 = vld [vmem:[%s11] sm:$0xff]
        %v1300 = vld [vmem:[%s11 + $0x8] sm:$0xff]
        %v1301 = vld [vmem:[%s12] sm:$0xff]
        %v1302 = vld [vmem:[%s12 + $0x8] sm:$0xff]
        %1304 = vset.pattern.permute.xlu0 0
        %1305 = vperm.xlu0 %1304, %v1301
        %v1306 = vpop.permute.xlu0 %1305
        %1309 = vset.pattern.permute.xlu0 0
        %1310 = vperm.xlu0 %1309, %v1302
        %v1311 = vpop.permute.xlu0 %1310
        %v1314 = vsel %vm1106, %v1299, 0
        %v1317 = vsel %vm1106, %v1300, 0
        %1319 = vmatpush.msra.mxu0 0.0
        %1320 = vmatpush.msra.mxu0 0.0
        %1321 = vmatpush.msra.mxu0 0.0
        %1322 = vmatpush.msra.mxu0 0.0
        %1323 = vmatpush.msra.mxu0 0.0
        %1324 = vmatpush.msra.mxu0 0.0
        %1325 = vmatpush.msra.mxu0 0.0
        %1326 = vmatpush.msra.mxu0 0.0
        %1327 = vmatpush.msra.mxu0 0.0
        %1328 = vmatpush.msra.mxu0 0.0
        %1329 = vmatpush.msra.mxu0 %v1298
        %1330 = vmatpush.msra.mxu0 %v1297
        %1331 = vmatpush.msra.mxu0 %v1268
        %1332 = vmatpush.msra.mxu0 %v1267
        %1333 = vmatpush.msra.mxu0 %v1284
        %1334 = vmatpush.msra.mxu0 %v1283
        %1335 = vmatmul.f32.gmra.mxu0 %v1314
        %v1336 = vpop.f32.mrf.mxu0
        %v1337 = vadd.f32 %v1306, %v1336
        %1338 = vmatmul.f32.gmra.mxu0 %v1317
        %v1339 = vpop.f32.mrf.mxu0
        %v1340 = vadd.f32 %v1311, %v1339
        %1341 = vdwg.mxu0
        %vm1342 = vcmask 130048
        %v1344 = vsel %vm1342, %v1337, 0
        %v1347 = vsel %vm1342, %v1340, 0
        %1349 = vmatpush.msra.mxu0 0.0
        %1350 = vmatpush.msra.mxu0 0.0
        %1351 = vmatpush.msra.mxu0 0.0
        %1352 = vmatpush.msra.mxu0 0.0
        %1353 = vmatpush.msra.mxu0 0.0
        %1354 = vmatpush.msra.mxu0 0.0
        %1355 = vmatpush.msra.mxu0 0.0
        %1356 = vmatpush.msra.mxu0 0.0
        %1357 = vmatpush.msra.mxu0 0.0
        %1358 = vmatpush.msra.mxu0 0.0
        %1359 = vmatpush.msra.mxu0 0.0
        %1360 = vmatpush.msra.mxu0 0.0
        %1361 = vmatpush.msra.mxu0 0.0
        %1362 = vmatpush.msra.mxu0 0.0
        %1363 = vmatpush.msra.mxu0 %v794
        %1364 = vmatpush.msra.mxu0 %v793
        %1365 = vmatmul.f32.gmra.mxu0 %v1344
        %v1366 = vpop.f32.mrf.mxu0
        %v1367 = vadd.f32 0.0, %v1366
        %1368 = vmatmul.f32.gmra.mxu0 %v1347
        %v1369 = vpop.f32.mrf.mxu0
        %v1370 = vadd.f32 0.0, %v1369
        %1371 = vdwg.mxu0
        %1372 = vmatpush.msra.mxu0 0.0
        %1373 = vmatpush.msra.mxu0 0.0
        %1374 = vmatpush.msra.mxu0 0.0
        %1375 = vmatpush.msra.mxu0 0.0
        %1376 = vmatpush.msra.mxu0 0.0
        %1377 = vmatpush.msra.mxu0 0.0
        %1378 = vmatpush.msra.mxu0 0.0
        %1379 = vmatpush.msra.mxu0 0.0
        %1380 = vmatpush.msra.mxu0 0.0
        %1381 = vmatpush.msra.mxu0 0.0
        %1382 = vmatpush.msra.mxu0 0.0
        %1383 = vmatpush.msra.mxu0 0.0
        %1384 = vmatpush.msra.mxu0 0.0
        %1385 = vmatpush.msra.mxu0 0.0
        %1386 = vmatpush.msra.mxu0 %v843
        %1387 = vmatpush.msra.mxu0 %v842
        %1388 = vmatmul.f32.gmra.mxu0 %v1344
        %v1389 = vpop.f32.mrf.mxu0
        %v1390 = vadd.f32 0.0, %v1389
        %1391 = vmatmul.f32.gmra.mxu0 %v1347
        %v1392 = vpop.f32.mrf.mxu0
        %v1393 = vadd.f32 0.0, %v1392
        %1394 = vdwg.mxu0
        %v1395 = vmax.f32 %v1367, %v1390
        %v1396 = vmax.f32 %v1370, %v1393
        %v1397 = vtanh.pop %v1395
        %v1398 = vtanh.pop %v1396
        %1401 = vrot.lane.b32.xlu0 %v1397, 121
        %v1402 = vpop.permute.xlu0 %1401
        %1403 = vrot.lane.b32.xlu0 %v1398, 121
        %v1404 = vpop.permute.xlu0 %1403
        %1407 = vrot.lane.b32.xlu0 %v1397, 1
        %v1408 = vpop.permute.xlu0 %1407
        %1409 = vrot.lane.b32.xlu0 %v1398, 1
        %v1410 = vpop.permute.xlu0 %1409
        %v1413 = vsel %vm708, %v1402, %v1408
        %v1414 = vsel %vm708, %v1404, %v1410
        %1415 = vrot.lane.b32.xlu0 %v1397, 127
        %v1416 = vpop.permute.xlu0 %1415
        %1417 = vrot.lane.b32.xlu0 %v1398, 127
        %v1418 = vpop.permute.xlu0 %1417
        %1421 = vrot.lane.b32.xlu0 %v1397, 7
        %v1422 = vpop.permute.xlu0 %1421
        %1423 = vrot.lane.b32.xlu0 %v1398, 7
        %v1424 = vpop.permute.xlu0 %1423
        %vm1427 = vcmask 56320
        %v1428 = vsel %vm1427, %v1416, %v1422
        %v1429 = vsel %vm1427, %v1418, %v1424
        %v1430 = vld [vmem:[%s13] sm:$0xff]
        %v1431 = vld [vmem:[%s13 + $0x8] sm:$0xff]
        %v1432 = vld [vmem:[%s14] sm:$0xff]
        %v1433 = vld [vmem:[%s14 + $0x8] sm:$0xff]
        %1435 = vset.pattern.permute.xlu0 0
        %1436 = vperm.xlu0 %1435, %v1432
        %v1437 = vpop.permute.xlu0 %1436
        %1440 = vset.pattern.permute.xlu0 0
        %1441 = vperm.xlu0 %1440, %v1433
        %v1442 = vpop.permute.xlu0 %1441
        %v1445 = vsel %vm1106, %v1430, 0
        %v1448 = vsel %vm1106, %v1431, 0
        %1450 = vmatpush.msra.mxu0 0.0
        %1451 = vmatpush.msra.mxu0 0.0
        %1452 = vmatpush.msra.mxu0 0.0
        %1453 = vmatpush.msra.mxu0 0.0
        %1454 = vmatpush.msra.mxu0 0.0
        %1455 = vmatpush.msra.mxu0 0.0
        %1456 = vmatpush.msra.mxu0 0.0
        %1457 = vmatpush.msra.mxu0 0.0
        %1458 = vmatpush.msra.mxu0 0.0
        %1459 = vmatpush.msra.mxu0 0.0
        %1460 = vmatpush.msra.mxu0 %v1429
        %1461 = vmatpush.msra.mxu0 %v1428
        %1462 = vmatpush.msra.mxu0 %v1398
        %1463 = vmatpush.msra.mxu0 %v1397
        %1464 = vmatpush.msra.mxu0 %v1414
        %1465 = vmatpush.msra.mxu0 %v1413
        %1466 = vmatmul.f32.gmra.mxu0 %v1445
        %v1467 = vpop.f32.mrf.mxu0
        %v1468 = vadd.f32 %v1437, %v1467
        %1469 = vmatmul.f32.gmra.mxu0 %v1448
        %v1470 = vpop.f32.mrf.mxu0
        %v1471 = vadd.f32 %v1442, %v1470
        %1472 = vdwg.mxu0
        %v1473 = vtanh.pop %v1468
        %v1474 = vtanh.pop %v1471
        %1477 = vrot.lane.b32.xlu0 %v1473, 121
        %v1478 = vpop.permute.xlu0 %1477
        %1479 = vrot.lane.b32.xlu0 %v1474, 121
        %v1480 = vpop.permute.xlu0 %1479
        %1483 = vrot.lane.b32.xlu0 %v1473, 1
        %v1484 = vpop.permute.xlu0 %1483
        %1485 = vrot.lane.b32.xlu0 %v1474, 1
        %v1486 = vpop.permute.xlu0 %1485
        %v1489 = vsel %vm708, %v1478, %v1484
        %v1490 = vsel %vm708, %v1480, %v1486
        %1491 = vrot.lane.b32.xlu0 %v1473, 127
        %v1492 = vpop.permute.xlu0 %1491
        %1493 = vrot.lane.b32.xlu0 %v1474, 127
        %v1494 = vpop.permute.xlu0 %1493
        %1497 = vrot.lane.b32.xlu0 %v1473, 7
        %v1498 = vpop.permute.xlu0 %1497
        %1499 = vrot.lane.b32.xlu0 %v1474, 7
        %v1500 = vpop.permute.xlu0 %1499
        %v1503 = vsel %vm1427, %v1492, %v1498
        %v1504 = vsel %vm1427, %v1494, %v1500
        %v1505 = vld [vmem:[%s15] sm:$0xff]
        %v1506 = vld [vmem:[%s15 + $0x8] sm:$0xff]
        %v1507 = vld [vmem:[%s16] sm:$0xff]
        %v1508 = vld [vmem:[%s16 + $0x8] sm:$0xff]
        %1510 = vset.pattern.permute.xlu0 0
        %1511 = vperm.xlu0 %1510, %v1507
        %v1512 = vpop.permute.xlu0 %1511
        %1515 = vset.pattern.permute.xlu0 0
        %1516 = vperm.xlu0 %1515, %v1508
        %v1517 = vpop.permute.xlu0 %1516
        %v1520 = vsel %vm1106, %v1505, 0
        %v1523 = vsel %vm1106, %v1506, 0
        %1525 = vmatpush.msra.mxu0 0.0
        %1526 = vmatpush.msra.mxu0 0.0
        %1527 = vmatpush.msra.mxu0 0.0
        %1528 = vmatpush.msra.mxu0 0.0
        %1529 = vmatpush.msra.mxu0 0.0
        %1530 = vmatpush.msra.mxu0 0.0
        %1531 = vmatpush.msra.mxu0 0.0
        %1532 = vmatpush.msra.mxu0 0.0
        %1533 = vmatpush.msra.mxu0 0.0
        %1534 = vmatpush.msra.mxu0 0.0
        %1535 = vmatpush.msra.mxu0 %v1504
        %1536 = vmatpush.msra.mxu0 %v1503
        %1537 = vmatpush.msra.mxu0 %v1474
        %1538 = vmatpush.msra.mxu0 %v1473
        %1539 = vmatpush.msra.mxu0 %v1490
        %1540 = vmatpush.msra.mxu0 %v1489
        %1541 = vmatmul.f32.gmra.mxu0 %v1520
        %v1542 = vpop.f32.mrf.mxu0
        %v1543 = vadd.f32 %v1512, %v1542
        %1544 = vmatmul.f32.gmra.mxu0 %v1523
        %v1545 = vpop.f32.mrf.mxu0
        %v1546 = vadd.f32 %v1517, %v1545
        %1547 = vdwg.mxu0
        %vm1548 = vcmask 64512
        %v1550 = vsel %vm1548, %v1543, 0
        %v1553 = vsel %vm1548, %v1546, 0
        %1555 = vmatpush.msra.mxu0 0.0
        %1556 = vmatpush.msra.mxu0 0.0
        %1557 = vmatpush.msra.mxu0 0.0
        %1558 = vmatpush.msra.mxu0 0.0
        %1559 = vmatpush.msra.mxu0 0.0
        %1560 = vmatpush.msra.mxu0 0.0
        %1561 = vmatpush.msra.mxu0 0.0
        %1562 = vmatpush.msra.mxu0 0.0
        %1563 = vmatpush.msra.mxu0 0.0
        %1564 = vmatpush.msra.mxu0 0.0
        %1565 = vmatpush.msra.mxu0 0.0
        %1566 = vmatpush.msra.mxu0 0.0
        %1567 = vmatpush.msra.mxu0 0.0
        %1568 = vmatpush.msra.mxu0 0.0
        %1569 = vmatpush.msra.mxu0 0.0
        %1570 = vmatpush.msra.mxu0 %v793
        %1571 = vmatmul.f32.gmra.mxu0 %v1550
        %v1572 = vpop.f32.mrf.mxu0
        %v1573 = vadd.f32 0.0, %v1572
        %1574 = vmatmul.f32.gmra.mxu0 %v1553
        %v1575 = vpop.f32.mrf.mxu0
        %v1576 = vadd.f32 0.0, %v1575
        %1577 = vdwg.mxu0
        %1578 = vmatpush.msra.mxu0 0.0
        %1579 = vmatpush.msra.mxu0 0.0
        %1580 = vmatpush.msra.mxu0 0.0
        %1581 = vmatpush.msra.mxu0 0.0
        %1582 = vmatpush.msra.mxu0 0.0
        %1583 = vmatpush.msra.mxu0 0.0
        %1584 = vmatpush.msra.mxu0 0.0
        %1585 = vmatpush.msra.mxu0 0.0
        %1586 = vmatpush.msra.mxu0 0.0
        %1587 = vmatpush.msra.mxu0 0.0
        %1588 = vmatpush.msra.mxu0 0.0
        %1589 = vmatpush.msra.mxu0 0.0
        %1590 = vmatpush.msra.mxu0 0.0
        %1591 = vmatpush.msra.mxu0 0.0
        %1592 = vmatpush.msra.mxu0 0.0
        %1593 = vmatpush.msra.mxu0 %v842
        %1594 = vmatmul.f32.gmra.mxu0 %v1550
        %v1595 = vpop.f32.mrf.mxu0
        %v1596 = vadd.f32 0.0, %v1595
        %1597 = vmatmul.f32.gmra.mxu0 %v1553
        %v1598 = vpop.f32.mrf.mxu0
        %v1599 = vadd.f32 0.0, %v1598
        %1600 = vdwg.mxu0
        %v1601 = vmax.f32 %v1573, %v1596
        %v1602 = vmax.f32 %v1576, %v1599
        %v1603 = vtanh.pop %v1601
        %v1604 = vtanh.pop %v1602
        %v1606 = vrot.slane %v1603, 1
        %1607 = vrot.lane.b32.xlu0 %v1606, 4
        %v1608 = vpop.permute.xlu0 %1607
        %v1610 = vrot.slane %v1603, 2
        %1611 = vrot.lane.b32.xlu0 %v1610, 8
        %v1612 = vpop.permute.xlu0 %1611
        %v1614 = vrot.slane %v1603, 3
        %1615 = vrot.lane.b32.xlu0 %v1614, 12
        %v1616 = vpop.permute.xlu0 %1615
        %v1618 = vrot.slane %v1603, 4
        %1619 = vrot.lane.b32.xlu0 %v1618, 16
        %v1620 = vpop.permute.xlu0 %1619
        %v1622 = vrot.slane %v1603, 5
        %1623 = vrot.lane.b32.xlu0 %v1622, 20
        %v1624 = vpop.permute.xlu0 %1623
        %v1626 = vrot.slane %v1603, 6
        %1627 = vrot.lane.b32.xlu0 %v1626, 24
        %v1628 = vpop.permute.xlu0 %1627
        %v1630 = vrot.slane %v1603, 7
        %1631 = vrot.lane.b32.xlu0 %v1630, 28
        %v1632 = vpop.permute.xlu0 %1631
        %1635 = vrot.lane.b32.xlu0 %v1604, 32
        %v1636 = vpop.permute.xlu0 %1635
        %v1638 = vrot.slane %v1604, 1
        %1639 = vrot.lane.b32.xlu0 %v1638, 36
        %v1640 = vpop.permute.xlu0 %1639
        %v1642 = vrot.slane %v1604, 2
        %1643 = vrot.lane.b32.xlu0 %v1642, 40
        %v1644 = vpop.permute.xlu0 %1643
        %v1646 = vrot.slane %v1604, 3
        %1647 = vrot.lane.b32.xlu0 %v1646, 44
        %v1648 = vpop.permute.xlu0 %1647
        %v1650 = vrot.slane %v1604, 4
        %1651 = vrot.lane.b32.xlu0 %v1650, 48
        %v1652 = vpop.permute.xlu0 %1651
        %v1654 = vrot.slane %v1604, 5
        %1655 = vrot.lane.b32.xlu0 %v1654, 52
        %v1656 = vpop.permute.xlu0 %1655
        %v1658 = vrot.slane %v1604, 6
        %1659 = vrot.lane.b32.xlu0 %v1658, 56
        %v1660 = vpop.permute.xlu0 %1659
        %v1662 = vrot.slane %v1604, 7
        %1663 = vrot.lane.b32.xlu0 %v1662, 60
        %v1664 = vpop.permute.xlu0 %1663
        %vm1666 = vcmask 31744
        %v1667 = vsel %vm1666, %v1603, %v1608
        %v1668 = vsel %vm1548, %v1667, %v1612
        %v1669 = vsel %vm927, %v1668, %v1616
        %v1670 = vsel %vm1342, %v1669, %v1620
        %vm1671 = vcmask 162816
        %v1672 = vsel %vm1671, %v1670, %v1624
        %v1673 = vsel %vm1030, %v1672, %v1628
        %vm1674 = vcmask 228352
        %v1675 = vsel %vm1674, %v1673, %v1632
        %v1676 = vsel %vm1136, %v1675, %v1636
        %vm1677 = vcmask 293888
        %v1678 = vsel %vm1677, %v1676, %v1640
        %vm1679 = vcmask 326656
        %v1680 = vsel %vm1679, %v1678, %v1644
        %vm1681 = vcmask 359424
        %v1682 = vsel %vm1681, %v1680, %v1648
        %v1683 = vsel %vm1106, %v1682, %v1652
        %vm1684 = vcmask 424960
        %v1685 = vsel %vm1684, %v1683, %v1656
        %vm1686 = vcmask 457728
        %v1687 = vsel %vm1686, %v1685, %v1660
        %vm1688 = vcmask 490496
        %v1689 = vsel %vm1688, %v1687, %v1664
        %v1690 = vld [vmem:[%s17] sm:$0xff]
        %v1691 = vld [vmem:[%s17 + $0x8] sm:$0xff]
        %v1692 = vld [vmem:[%s17 + $0x10] sm:$0xff]
        %v1693 = vld [vmem:[%s17 + $0x18] sm:$0xff]
        %v1694 = vld [vmem:[%s17 + $0x20] sm:$0xff]
        %v1695 = vld [vmem:[%s17 + $0x28] sm:$0xff]
        %v1696 = vld [vmem:[%s17 + $0x30] sm:$0xff]
        %v1697 = vld [vmem:[%s17 + $0x38] sm:$0xff]
        %v1698 = vld [vmem:[%s18] sm:$0x1]
        %v1700 = vsel %vm954, %v1689, 0
        %1702 = vmatpush.msra.mxu0 0.0
        %1703 = vmatpush.msra.mxu0 0.0
        %1704 = vmatpush.msra.mxu0 0.0
        %1705 = vmatpush.msra.mxu0 0.0
        %1706 = vmatpush.msra.mxu0 0.0
        %1707 = vmatpush.msra.mxu0 0.0
        %1708 = vmatpush.msra.mxu0 0.0
        %1709 = vmatpush.msra.mxu0 0.0
        %1710 = vmatpush.msra.mxu0 %v1697
        %1711 = vmatpush.msra.mxu0 %v1696
        %1712 = vmatpush.msra.mxu0 %v1695
        %1713 = vmatpush.msra.mxu0 %v1694
        %1714 = vmatpush.msra.mxu0 %v1693
        %1715 = vmatpush.msra.mxu0 %v1692
        %1716 = vmatpush.msra.mxu0 %v1691
        %1717 = vmatpush.msra.mxu0 %v1690
        %1718 = vmatmul.f32.gmra.mxu0 %v1700
        %v1719 = vpop.f32.mrf.mxu0
        %v1720 = vadd.f32 %v1698, %v1719
        %1721 = vdwg.mxu0
        %v1722 = vtanh.pop %v1720
        %v1723 = vld [vmem:[%s19] sm:$0xff]
        %v1724 = vld [vmem:[%s19 + $0x8] sm:$0xff]
        %v1725 = vld [vmem:[%s19 + $0x10] sm:$0xff]
        %v1726 = vld [vmem:[%s19 + $0x18] sm:$0xff]
        %v1727 = vld [vmem:[%s20] sm:$0x1]
        %v1729 = vsel %vm1136, %v1722, 0
        %1731 = vmatpush.msra.mxu0 0.0
        %1732 = vmatpush.msra.mxu0 0.0
        %1733 = vmatpush.msra.mxu0 0.0
        %1734 = vmatpush.msra.mxu0 0.0
        %1735 = vmatpush.msra.mxu0 0.0
        %1736 = vmatpush.msra.mxu0 0.0
        %1737 = vmatpush.msra.mxu0 0.0
        %1738 = vmatpush.msra.mxu0 0.0
        %1739 = vmatpush.msra.mxu0 0.0
        %1740 = vmatpush.msra.mxu0 0.0
        %1741 = vmatpush.msra.mxu0 0.0
        %1742 = vmatpush.msra.mxu0 0.0
        %1743 = vmatpush.msra.mxu0 %v1726
        %1744 = vmatpush.msra.mxu0 %v1725
        %1745 = vmatpush.msra.mxu0 %v1724
        %1746 = vmatpush.msra.mxu0 %v1723
        %1747 = vmatmul.f32.gmra.mxu0 %v1729
        %v1748 = vpop.f32.mrf.mxu0
        %v1749 = vadd.f32 %v1727, %v1748
        %1750 = vdwg.mxu0
        %v1751 = vtanh.pop %v1749
        %v1752 = vld [vmem:[%s21] sm:$0xff]
        %v1753 = vld [vmem:[%s21 + $0x8] sm:$0xff]
        %v1754 = vld [vmem:[%s22] sm:$0x1]
        %v1756 = vsel %vm1342, %v1751, 0
        %1758 = vmatpush.msra.mxu0 0.0
        %1759 = vmatpush.msra.mxu0 0.0
        %1760 = vmatpush.msra.mxu0 0.0
        %1761 = vmatpush.msra.mxu0 0.0
        %1762 = vmatpush.msra.mxu0 0.0
        %1763 = vmatpush.msra.mxu0 0.0
        %1764 = vmatpush.msra.mxu0 0.0
        %1765 = vmatpush.msra.mxu0 0.0
        %1766 = vmatpush.msra.mxu0 0.0
        %1767 = vmatpush.msra.mxu0 0.0
        %1768 = vmatpush.msra.mxu0 0.0
        %1769 = vmatpush.msra.mxu0 0.0
        %1770 = vmatpush.msra.mxu0 0.0
        %1771 = vmatpush.msra.mxu0 0.0
        %1772 = vmatpush.msra.mxu0 %v1753
        %1773 = vmatpush.msra.mxu0 %v1752
        %1774 = vmatmul.f32.gmra.mxu0 %v1756
        %v1775 = vpop.f32.mrf.mxu0
        %v1776 = vadd.f32 %v1754, %v1775
        %1777 = vdwg.mxu0
        %vm1778 = vcmask 131072
        %1779 = vst.msk [vmem:[%s698] sm:$0x1] %vm1778, %v1776
        %s1780 = sand.u32 %s533, 1
        %s1781 = scalar_lea.sflag [#allocation3], %s1780
        %s1782 = sand.u32 %s533, 1
        %s1783 = scalar_lea.vmem [#allocation2], %s1782
        // Predicated region
        $region113: #{vgg11_forward.1} parent=111 // pred_check
          %p1784 = pneg %p543
        $region114: #{vgg11_forward.1} parent=111 // pred_check_branch
          %1786 = sbr.rel (%p1784) target = $region116
        $region115: #{vgg11_forward.1} parent=111 // pred_region
          %1788 = vsyncadd %s1781, 0
          %s1789 = scalar_lea.hbm %s23, %s37
          %s1791 = sshll.u32 %s1783, 4
          %s1792 = int_to_ptr.vmem [resolvable:$true] %s1791
          %s1793 = sshll.u32 %s1789, 4
          %s1794 = int_to_ptr.hbm [resolvable:$true] %s1793
          %1796 = dma.vmem_to_hbm [thread:$0]  %s1792, 16, %s1794, %s1781
        $region116: #{vgg11_forward.1} parent=111 // pred_fallthru
          _
      $region112: #{vgg11_forward.1} parent=5 // pred_fallthru
        _
      %p1797 = scmp.le.s32.totalorder 2, %s32
      // Predicated region
      $region117: #{vgg11_forward.1} parent=5 // pred_check
        %p1798 = pneg %p1797
      $region118: #{vgg11_forward.1} parent=5 // pred_check_branch
        %1800 = sbr.rel (%p1798) target = $region120
      $region119: #{vgg11_forward.1} parent=5 // pred_region
        %s1801 = ssub.s32 %s32, 2
        // Predicated region
        $region121: #{vgg11_forward.1} parent=119 // pred_check
          %p1802 = pneg %p549
        $region122: #{vgg11_forward.1} parent=119 // pred_check_branch
          %1804 = sbr.rel (%p1802) target = $region124
        $region123: #{vgg11_forward.1} parent=119 // pred_region
          %s1805 = sand.u32 %s534, 1
          %s1806 = scalar_lea.sflag [#allocation3], %s1805
          %s1807 = sand.u32 %s534, 1
          %s1808 = scalar_lea.vmem [#allocation2], %s1807
          %1810 = dma.done %s1806, 16
        $region124: #{vgg11_forward.1} parent=119 // pred_fallthru
          _
      $region120: #{vgg11_forward.1} parent=5 // pred_fallthru
        _
    $region6: #{vgg11_forward.1} parent=1 // loop_footer
      %s36 = sadd.s32 1, %s32
    $region7: #{vgg11_forward.1} parent=1 // loop_footer_branch
      %31 = sbr.rel target = $region3
    $region8: #{vgg11_forward.1} parent=1 // loop_exit
      _
    %1811 = vsyncpa [#allocation3], 1
    %s1812 = scalar_lea.sflag [#allocation3], 1
    %1813 = vsyncpa %s1812, 1

</llo_original>
